<compile_context>
chip_gen: v7x
topology: tpu7x:2x2x1
jax: 0.10.0
libtpu: 0.0.40
codegen_flags: <defaults>
</compile_context>

<pallas_src>
import functools
import math

import jax
import jax.numpy as jnp
from jax.experimental import pallas as pl
from jax.experimental.pallas import tpu as pltpu

_MiB = 1024 * 1024


def _round_up(x, m):
    return ((x + m - 1) // m) * m


def _vmem_capacity_bytes():
    try:
        return int(pltpu.get_tpu_info().vmem_capacity_bytes)
    except Exception:
        return 64 * _MiB  # conservative fallback (v7x per-TC VMEM)


# ---------------------- path 1: VMEM-resident table -------------------------

def _embed_vmem_kernel(ids_ref, emb_ref, out_ref, *, scale, tok_block, group):
    """ids_ref: SMEM (N_pad,) int32 (scalar-prefetched full id stream)
       emb_ref: VMEM (vocab, d_model) -- resident, fetched from HBM once
       out_ref: VMEM (tok_block, d_model) output tile."""
    base = pl.program_id(0) * tok_block
    # Gather `group`(=8) rows per iteration so each store is an (8,128)-aligned
    # unmasked slab.  Static Python loops -> static store offsets; only the
    # gather row index is dynamic.
    for g in range(tok_block // group):
        rows = []
        for u in range(group):
            row = ids_ref[base + g * group + u]
            rows.append(emb_ref[pl.ds(row, 1), :])
        tile = jnp.concatenate(rows, axis=0)                    # (group, d_model)
        out_ref[g * group:(g + 1) * group, :] = (
            tile.astype(jnp.float32) * scale).astype(out_ref.dtype)


def _embed_small_table(ids, emb_table, *, tok_block, scale, out_dtype):
    n_pad, = ids.shape
    vocab, d_model = emb_table.shape
    num_blocks = n_pad // tok_block

    table_bytes = vocab * d_model * jnp.dtype(emb_table.dtype).itemsize
    out_tile_bytes = tok_block * d_model * jnp.dtype(out_dtype).itemsize
    need = 2 * table_bytes + 2 * out_tile_bytes + 4 * _MiB
    vmem_limit = int(min(max(need, 32 * _MiB), 0.9 * _vmem_capacity_bytes()))

    kernel = functools.partial(_embed_vmem_kernel, scale=scale,
                               tok_block=tok_block, group=8)
    return pl.pallas_call(
        kernel,
        out_shape=jax.ShapeDtypeStruct((n_pad, d_model), out_dtype),
        grid_spec=pltpu.PrefetchScalarGridSpec(
            num_scalar_prefetch=1,                          # ids -> SMEM
            grid=(num_blocks,),
            in_specs=[
                # constant index_map -> table DMA'd HBM->VMEM once, resident
                pl.BlockSpec((vocab, d_model), lambda i, ids: (0, 0)),
            ],
            out_specs=pl.BlockSpec((tok_block, d_model), lambda i, ids: (i, 0)),
        ),
        compiler_params=pltpu.CompilerParams(
            dimension_semantics=("parallel",),              # steps independent
            vmem_limit_bytes=vmem_limit),
    )(ids, emb_table)


# ---------------------- path 2: HBM table, DMA row-gather -------------------

def _embed_hbm_kernel(ids_ref, emb_hbm, out_ref, buf, sem, *,
                      scale, tok_block, issue_unroll):
    """ids_ref: SMEM (N_pad,) int32
       emb_hbm: HBM (vocab, d_model) raw ref (no auto-DMA)
       out_ref: VMEM (tok_block, d_model) output tile
       buf    : VMEM (2, tok_block, d_model) double-buffered landing zone
       sem    : DMA semaphores (2,), one per buffer slot."""
    i = pl.program_id(0)
    n = pl.num_programs(0)

    def issue_block(block_idx, slot):
        base = block_idx * tok_block

        # Partially-unrolled issue loop: several SMEM id loads + DMA
        # descriptors per iteration get scheduler visibility.
        @pl.loop(0, tok_block // issue_unroll)
        def _(g):
            for u in range(issue_unroll):
                t = g * issue_unroll + u
                row = ids_ref[base + t]
                pltpu.make_async_copy(
                    emb_hbm.at[pl.ds(row, 1), :],
                    buf.at[slot, pl.ds(t, 1), :],
                    sem.at[slot],
                ).start()

    # Prime the pipeline: block 0's gather is issued only on the first step.
    @pl.when(i == 0)
    def _():
        issue_block(0, 0)

    # One-block lookahead: ids for block i+1 are already in SMEM, so issue its
    # row gathers into the other slot while block i is consumed.
    @pl.when(i + 1 < n)
    def _():
        issue_block(i + 1, (i + 1) & 1)

    # Single aggregate wait: all row copies for this slot signal the same
    # semaphore and their total byte count equals one (tok_block, d_model)
    # tile, so one whole-tile descriptor waits for all of them.
    slot = i & 1
    pltpu.make_async_copy(
        emb_hbm.at[pl.ds(0, tok_block), :],      # shape-only src for the wait
        buf.at[slot],
        sem.at[slot],
    ).wait()

    out_ref[...] = (buf[slot].astype(jnp.float32) * scale).astype(out_ref.dtype)


def _embed_large_table(ids, emb_table, *, tok_block, scale, out_dtype):
    n_pad, = ids.shape
    vocab, d_model = emb_table.shape
    num_blocks = n_pad // tok_block

    buf_bytes = 2 * tok_block * d_model * jnp.dtype(emb_table.dtype).itemsize
    out_tile_bytes = tok_block * d_model * jnp.dtype(out_dtype).itemsize
    need = buf_bytes + 2 * out_tile_bytes + 4 * _MiB
    vmem_limit = int(min(max(need, 32 * _MiB), 0.9 * _vmem_capacity_bytes()))

    kernel = functools.partial(_embed_hbm_kernel, scale=scale,
                               tok_block=tok_block, issue_unroll=8)
    return pl.pallas_call(
        kernel,
        out_shape=jax.ShapeDtypeStruct((n_pad, d_model), out_dtype),
        grid_spec=pltpu.PrefetchScalarGridSpec(
            num_scalar_prefetch=1,                           # ids -> SMEM
            grid=(num_blocks,),
            in_specs=[pl.BlockSpec(memory_space=pl.ANY)],    # table stays in HBM
            out_specs=pl.BlockSpec((tok_block, d_model), lambda i, ids: (i, 0)),
            scratch_shapes=[
                pltpu.VMEM((2, tok_block, d_model), emb_table.dtype),
                pltpu.SemaphoreType.DMA((2,)),
            ],
        ),
        compiler_params=pltpu.CompilerParams(
            # cross-step prefetch carry (slot filled at step i-1) needs
            # sequential grid execution on one core
            dimension_semantics=("arbitrary",),
            vmem_limit_bytes=vmem_limit),
    )(ids, emb_table)


# ---------------------------- public wrapper --------------------------------

def input_embeddings(x, emb_table, *, tok_block=None, force_hbm_gather=False):
    """x: (B, S) int token ids; emb_table: (vocab, d_model).

    Returns (B, S, d_model) = emb_table[x] * sqrt(d_model) in emb_table.dtype.
    Token ids must lie in [0, vocab) (same contract as nn.Embedding).
    """
    B, S = x.shape
    vocab, d_model = emb_table.shape
    n = B * S
    scale = math.sqrt(d_model)
    out_dtype = emb_table.dtype

    # Bigger blocks amortize per-step overhead and keep more rows in flight;
    # must be a multiple of 8 (aligned group stores).
    if tok_block is None:
        tok_block = 512
    tok_block = _round_up(min(tok_block, _round_up(n, 8)), 8)

    # Ragged B*S: pad the id stream with token 0 (always valid) and slice the
    # tail off the output instead of asserting divisibility.
    n_pad = _round_up(n, tok_block)
    ids = x.reshape(n).astype(jnp.int32)
    if n_pad != n:
        ids = jnp.concatenate([ids, jnp.zeros((n_pad - n,), jnp.int32)])
    # TODO(synk): for very long sequences (N ~ 1e5+) chunk the id stream over
    # several pallas_calls to bound the SMEM scalar-prefetch footprint.
    # TODO(synk): if d_model is not a multiple of 128 in real configs, pad the
    # table's last dim to 128 to keep output stores unmasked.

    table_bytes = vocab * d_model * jnp.dtype(emb_table.dtype).itemsize
    small = table_bytes <= _vmem_capacity_bytes() // 4   # v7x-safe threshold

    if small and not force_hbm_gather:
        out_flat = _embed_small_table(ids, emb_table, tok_block=tok_block,
                                      scale=scale, out_dtype=out_dtype)
    else:
        out_flat = _embed_large_table(ids, emb_table, tok_block=tok_block,
                                      scale=scale, out_dtype=out_dtype)

    return out_flat[:n].reshape(B, S, d_model)


if __name__ == "__main__":
    d_model = 256
    vocab_size = 512
    B, S = 2, 128

    key = jax.random.PRNGKey(0)
    k_emb, k_ids = jax.random.split(key)
    # deterministic synthetic nn.Embedding weight: (vocab, d_model)
    emb_table = jax.random.normal(k_emb, (vocab_size, d_model), dtype=jnp.float32)
    x = jax.random.randint(k_ids, (B, S), 0, vocab_size, dtype=jnp.int32)

    # small tok_block so the test exercises a multi-step grid with the
    # VMEM-resident table path
    out = input_embeddings(x, emb_table, tok_block=64)
    out = jax.block_until_ready(out)
    ref = emb_table[x] * math.sqrt(d_model)
    assert out.shape == (B, S, d_model)
    assert jnp.allclose(out, ref, atol=1e-5, rtol=1e-5)

    # ragged B*S (not a multiple of tok_block): exercises the padding path
    x2 = x[:, :100]
    out2 = jax.block_until_ready(input_embeddings(x2, emb_table, tok_block=64))
    ref2 = emb_table[x2] * math.sqrt(d_model)
    assert out2.shape == (2, 100, d_model)
    assert jnp.allclose(out2, ref2, atol=1e-5, rtol=1e-5)

    print("KERNEL_OK")
</pallas_src>

<mosaic_0001>
module attributes {stable_mosaic.version = 11 : i64} {
  func.func @_embed_vmem_kernel(%arg0: i32, %arg1: memref<256xi32, #tpu.memory_space<smem>>, %arg2: memref<512x256xf32, #tpu.memory_space<vmem>>, %arg3: memref<64x256xf32, #tpu.memory_space<vmem>>) attributes {dimension_semantics = [#tpu.dimension_semantics<parallel>], iteration_bounds = array<i64: 4>, scalar_prefetch = 1 : i64, scratch_operands = 0 : i64, tpu.core_type = #tpu.core_type<tc>, window_params = [{pipeline_mode = #tpu.pipeline_mode<synchronous>, transform_indices = @transform_0, window_bounds = array<i64: 512, 256>}, {transform_indices = @transform_1, window_bounds = array<i64: 64, 256>}]} {
    %c64_i32 = arith.constant 64 : i32
    %0 = arith.muli %arg0, %c64_i32 : i32
    %c0_i32 = arith.constant 0 : i32
    %1 = arith.addi %0, %c0_i32 : i32
    %c0_i32_0 = arith.constant 0 : i32
    %2 = arith.addi %1, %c0_i32_0 : i32
    %3 = arith.index_cast %2 : i32 to index
    %4 = memref.load %arg1[%3] : memref<256xi32, #tpu.memory_space<smem>>
    %5 = arith.index_cast %4 : i32 to index
    %c0 = arith.constant 0 : index
    %6 = vector.load %arg2[%5, %c0] : memref<512x256xf32, #tpu.memory_space<vmem>>, vector<1x256xf32>
    %c0_i32_1 = arith.constant 0 : i32
    %7 = arith.addi %0, %c0_i32_1 : i32
    %c1_i32 = arith.constant 1 : i32
    %8 = arith.addi %7, %c1_i32 : i32
    %9 = arith.index_cast %8 : i32 to index
    %10 = memref.load %arg1[%9] : memref<256xi32, #tpu.memory_space<smem>>
    %11 = arith.index_cast %10 : i32 to index
    %c0_2 = arith.constant 0 : index
    %12 = vector.load %arg2[%11, %c0_2] : memref<512x256xf32, #tpu.memory_space<vmem>>, vector<1x256xf32>
    %c0_i32_3 = arith.constant 0 : i32
    %13 = arith.addi %0, %c0_i32_3 : i32
    %c2_i32 = arith.constant 2 : i32
    %14 = arith.addi %13, %c2_i32 : i32
    %15 = arith.index_cast %14 : i32 to index
    %16 = memref.load %arg1[%15] : memref<256xi32, #tpu.memory_space<smem>>
    %17 = arith.index_cast %16 : i32 to index
    %c0_4 = arith.constant 0 : index
    %18 = vector.load %arg2[%17, %c0_4] : memref<512x256xf32, #tpu.memory_space<vmem>>, vector<1x256xf32>
    %c0_i32_5 = arith.constant 0 : i32
    %19 = arith.addi %0, %c0_i32_5 : i32
    %c3_i32 = arith.constant 3 : i32
    %20 = arith.addi %19, %c3_i32 : i32
    %21 = arith.index_cast %20 : i32 to index
    %22 = memref.load %arg1[%21] : memref<256xi32, #tpu.memory_space<smem>>
    %23 = arith.index_cast %22 : i32 to index
    %c0_6 = arith.constant 0 : index
    %24 = vector.load %arg2[%23, %c0_6] : memref<512x256xf32, #tpu.memory_space<vmem>>, vector<1x256xf32>
    %c0_i32_7 = arith.constant 0 : i32
    %25 = arith.addi %0, %c0_i32_7 : i32
    %c4_i32 = arith.constant 4 : i32
    %26 = arith.addi %25, %c4_i32 : i32
    %27 = arith.index_cast %26 : i32 to index
    %28 = memref.load %arg1[%27] : memref<256xi32, #tpu.memory_space<smem>>
    %29 = arith.index_cast %28 : i32 to index
    %c0_8 = arith.constant 0 : index
    %30 = vector.load %arg2[%29, %c0_8] : memref<512x256xf32, #tpu.memory_space<vmem>>, vector<1x256xf32>
    %c0_i32_9 = arith.constant 0 : i32
    %31 = arith.addi %0, %c0_i32_9 : i32
    %c5_i32 = arith.constant 5 : i32
    %32 = arith.addi %31, %c5_i32 : i32
    %33 = arith.index_cast %32 : i32 to index
    %34 = memref.load %arg1[%33] : memref<256xi32, #tpu.memory_space<smem>>
    %35 = arith.index_cast %34 : i32 to index
    %c0_10 = arith.constant 0 : index
    %36 = vector.load %arg2[%35, %c0_10] : memref<512x256xf32, #tpu.memory_space<vmem>>, vector<1x256xf32>
    %c0_i32_11 = arith.constant 0 : i32
    %37 = arith.addi %0, %c0_i32_11 : i32
    %c6_i32 = arith.constant 6 : i32
    %38 = arith.addi %37, %c6_i32 : i32
    %39 = arith.index_cast %38 : i32 to index
    %40 = memref.load %arg1[%39] : memref<256xi32, #tpu.memory_space<smem>>
    %41 = arith.index_cast %40 : i32 to index
    %c0_12 = arith.constant 0 : index
    %42 = vector.load %arg2[%41, %c0_12] : memref<512x256xf32, #tpu.memory_space<vmem>>, vector<1x256xf32>
    %c0_i32_13 = arith.constant 0 : i32
    %43 = arith.addi %0, %c0_i32_13 : i32
    %c7_i32 = arith.constant 7 : i32
    %44 = arith.addi %43, %c7_i32 : i32
    %45 = arith.index_cast %44 : i32 to index
    %46 = memref.load %arg1[%45] : memref<256xi32, #tpu.memory_space<smem>>
    %47 = arith.index_cast %46 : i32 to index
    %c0_14 = arith.constant 0 : index
    %48 = vector.load %arg2[%47, %c0_14] : memref<512x256xf32, #tpu.memory_space<vmem>>, vector<1x256xf32>
    %49 = tpu.concatenate %6, %12, %18, %24, %30, %36, %42, %48 in 0 : vector<1x256xf32>, vector<1x256xf32>, vector<1x256xf32>, vector<1x256xf32>, vector<1x256xf32>, vector<1x256xf32>, vector<1x256xf32>, vector<1x256xf32> -> vector<8x256xf32>
    %cst = arith.constant 1.600000e+01 : f32
    %50 = vector.broadcast %cst : f32 to vector<8x256xf32>
    %51 = arith.mulf %49, %50 : vector<8x256xf32>
    %c0_15 = arith.constant 0 : index
    %c0_16 = arith.constant 0 : index
    %52 = vector.load %arg3[%c0_15, %c0_16] : memref<64x256xf32, #tpu.memory_space<vmem>>, vector<8x256xf32>
    tpu.vector_store %arg3[%c0_15, %c0_16], %51 {strides = array<i32>} : memref<64x256xf32, #tpu.memory_space<vmem>>, vector<8x256xf32>,
    %c8_i32 = arith.constant 8 : i32
    %53 = arith.addi %0, %c8_i32 : i32
    %c0_i32_17 = arith.constant 0 : i32
    %54 = arith.addi %53, %c0_i32_17 : i32
    %55 = arith.index_cast %54 : i32 to index
    %56 = memref.load %arg1[%55] : memref<256xi32, #tpu.memory_space<smem>>
    %57 = arith.index_cast %56 : i32 to index
    %c0_18 = arith.constant 0 : index
    %58 = vector.load %arg2[%57, %c0_18] : memref<512x256xf32, #tpu.memory_space<vmem>>, vector<1x256xf32>
    %c8_i32_19 = arith.constant 8 : i32
    %59 = arith.addi %0, %c8_i32_19 : i32
    %c1_i32_20 = arith.constant 1 : i32
    %60 = arith.addi %59, %c1_i32_20 : i32
    %61 = arith.index_cast %60 : i32 to index
    %62 = memref.load %arg1[%61] : memref<256xi32, #tpu.memory_space<smem>>
    %63 = arith.index_cast %62 : i32 to index
    %c0_21 = arith.constant 0 : index
    %64 = vector.load %arg2[%63, %c0_21] : memref<512x256xf32, #tpu.memory_space<vmem>>, vector<1x256xf32>
    %c8_i32_22 = arith.constant 8 : i32
    %65 = arith.addi %0, %c8_i32_22 : i32
    %c2_i32_23 = arith.constant 2 : i32
    %66 = arith.addi %65, %c2_i32_23 : i32
    %67 = arith.index_cast %66 : i32 to index
    %68 = memref.load %arg1[%67] : memref<256xi32, #tpu.memory_space<smem>>
    %69 = arith.index_cast %68 : i32 to index
    %c0_24 = arith.constant 0 : index
    %70 = vector.load %arg2[%69, %c0_24] : memref<512x256xf32, #tpu.memory_space<vmem>>, vector<1x256xf32>
    %c8_i32_25 = arith.constant 8 : i32
    %71 = arith.addi %0, %c8_i32_25 : i32
    %c3_i32_26 = arith.constant 3 : i32
    %72 = arith.addi %71, %c3_i32_26 : i32
    %73 = arith.index_cast %72 : i32 to index
    %74 = memref.load %arg1[%73] : memref<256xi32, #tpu.memory_space<smem>>
    %75 = arith.index_cast %74 : i32 to index
    %c0_27 = arith.constant 0 : index
    %76 = vector.load %arg2[%75, %c0_27] : memref<512x256xf32, #tpu.memory_space<vmem>>, vector<1x256xf32>
    %c8_i32_28 = arith.constant 8 : i32
    %77 = arith.addi %0, %c8_i32_28 : i32
    %c4_i32_29 = arith.constant 4 : i32
    %78 = arith.addi %77, %c4_i32_29 : i32
    %79 = arith.index_cast %78 : i32 to index
    %80 = memref.load %arg1[%79] : memref<256xi32, #tpu.memory_space<smem>>
    %81 = arith.index_cast %80 : i32 to index
    %c0_30 = arith.constant 0 : index
    %82 = vector.load %arg2[%81, %c0_30] : memref<512x256xf32, #tpu.memory_space<vmem>>, vector<1x256xf32>
    %c8_i32_31 = arith.constant 8 : i32
    %83 = arith.addi %0, %c8_i32_31 : i32
    %c5_i32_32 = arith.constant 5 : i32
    %84 = arith.addi %83, %c5_i32_32 : i32
    %85 = arith.index_cast %84 : i32 to index
    %86 = memref.load %arg1[%85] : memref<256xi32, #tpu.memory_space<smem>>
    %87 = arith.index_cast %86 : i32 to index
    %c0_33 = arith.constant 0 : index
    %88 = vector.load %arg2[%87, %c0_33] : memref<512x256xf32, #tpu.memory_space<vmem>>, vector<1x256xf32>
    %c8_i32_34 = arith.constant 8 : i32
    %89 = arith.addi %0, %c8_i32_34 : i32
    %c6_i32_35 = arith.constant 6 : i32
    %90 = arith.addi %89, %c6_i32_35 : i32
    %91 = arith.index_cast %90 : i32 to index
    %92 = memref.load %arg1[%91] : memref<256xi32, #tpu.memory_space<smem>>
    %93 = arith.index_cast %92 : i32 to index
    %c0_36 = arith.constant 0 : index
    %94 = vector.load %arg2[%93, %c0_36] : memref<512x256xf32, #tpu.memory_space<vmem>>, vector<1x256xf32>
    %c8_i32_37 = arith.constant 8 : i32
    %95 = arith.addi %0, %c8_i32_37 : i32
    %c7_i32_38 = arith.constant 7 : i32
    %96 = arith.addi %95, %c7_i32_38 : i32
    %97 = arith.index_cast %96 : i32 to index
    %98 = memref.load %arg1[%97] : memref<256xi32, #tpu.memory_space<smem>>
    %99 = arith.index_cast %98 : i32 to index
    %c0_39 = arith.constant 0 : index
    %100 = vector.load %arg2[%99, %c0_39] : memref<512x256xf32, #tpu.memory_space<vmem>>, vector<1x256xf32>
    %101 = tpu.concatenate %58, %64, %70, %76, %82, %88, %94, %100 in 0 : vector<1x256xf32>, vector<1x256xf32>, vector<1x256xf32>, vector<1x256xf32>, vector<1x256xf32>, vector<1x256xf32>, vector<1x256xf32>, vector<1x256xf32> -> vector<8x256xf32>
    %cst_40 = arith.constant 1.600000e+01 : f32
    %102 = vector.broadcast %cst_40 : f32 to vector<8x256xf32>
    %103 = arith.mulf %101, %102 : vector<8x256xf32>
    %c8 = arith.constant 8 : index
    %c0_41 = arith.constant 0 : index
    %104 = vector.load %arg3[%c8, %c0_41] : memref<64x256xf32, #tpu.memory_space<vmem>>, vector<8x256xf32>
    tpu.vector_store %arg3[%c8, %c0_41], %103 {strides = array<i32>} : memref<64x256xf32, #tpu.memory_space<vmem>>, vector<8x256xf32>,
    %c16_i32 = arith.constant 16 : i32
    %105 = arith.addi %0, %c16_i32 : i32
    %c0_i32_42 = arith.constant 0 : i32
    %106 = arith.addi %105, %c0_i32_42 : i32
    %107 = arith.index_cast %106 : i32 to index
    %108 = memref.load %arg1[%107] : memref<256xi32, #tpu.memory_space<smem>>
    %109 = arith.index_cast %108 : i32 to index
    %c0_43 = arith.constant 0 : index
    %110 = vector.load %arg2[%109, %c0_43] : memref<512x256xf32, #tpu.memory_space<vmem>>, vector<1x256xf32>
    %c16_i32_44 = arith.constant 16 : i32
    %111 = arith.addi %0, %c16_i32_44 : i32
    %c1_i32_45 = arith.constant 1 : i32
    %112 = arith.addi %111, %c1_i32_45 : i32
    %113 = arith.index_cast %112 : i32 to index
    %114 = memref.load %arg1[%113] : memref<256xi32, #tpu.memory_space<smem>>
    %115 = arith.index_cast %114 : i32 to index
    %c0_46 = arith.constant 0 : index
    %116 = vector.load %arg2[%115, %c0_46] : memref<512x256xf32, #tpu.memory_space<vmem>>, vector<1x256xf32>
    %c16_i32_47 = arith.constant 16 : i32
    %117 = arith.addi %0, %c16_i32_47 : i32
    %c2_i32_48 = arith.constant 2 : i32
    %118 = arith.addi %117, %c2_i32_48 : i32
    %119 = arith.index_cast %118 : i32 to index
    %120 = memref.load %arg1[%119] : memref<256xi32, #tpu.memory_space<smem>>
    %121 = arith.index_cast %120 : i32 to index
    %c0_49 = arith.constant 0 : index
    %122 = vector.load %arg2[%121, %c0_49] : memref<512x256xf32, #tpu.memory_space<vmem>>, vector<1x256xf32>
    %c16_i32_50 = arith.constant 16 : i32
    %123 = arith.addi %0, %c16_i32_50 : i32
    %c3_i32_51 = arith.constant 3 : i32
    %124 = arith.addi %123, %c3_i32_51 : i32
    %125 = arith.index_cast %124 : i32 to index
    %126 = memref.load %arg1[%125] : memref<256xi32, #tpu.memory_space<smem>>
    %127 = arith.index_cast %126 : i32 to index
    %c0_52 = arith.constant 0 : index
    %128 = vector.load %arg2[%127, %c0_52] : memref<512x256xf32, #tpu.memory_space<vmem>>, vector<1x256xf32>
    %c16_i32_53 = arith.constant 16 : i32
    %129 = arith.addi %0, %c16_i32_53 : i32
    %c4_i32_54 = arith.constant 4 : i32
    %130 = arith.addi %129, %c4_i32_54 : i32
    %131 = arith.index_cast %130 : i32 to index
    %132 = memref.load %arg1[%131] : memref<256xi32, #tpu.memory_space<smem>>
    %133 = arith.index_cast %132 : i32 to index
    %c0_55 = arith.constant 0 : index
    %134 = vector.load %arg2[%133, %c0_55] : memref<512x256xf32, #tpu.memory_space<vmem>>, vector<1x256xf32>
    %c16_i32_56 = arith.constant 16 : i32
    %135 = arith.addi %0, %c16_i32_56 : i32
    %c5_i32_57 = arith.constant 5 : i32
    %136 = arith.addi %135, %c5_i32_57 : i32
    %137 = arith.index_cast %136 : i32 to index
    %138 = memref.load %arg1[%137] : memref<256xi32, #tpu.memory_space<smem>>
    %139 = arith.index_cast %138 : i32 to index
    %c0_58 = arith.constant 0 : index
    %140 = vector.load %arg2[%139, %c0_58] : memref<512x256xf32, #tpu.memory_space<vmem>>, vector<1x256xf32>
    %c16_i32_59 = arith.constant 16 : i32
    %141 = arith.addi %0, %c16_i32_59 : i32
    %c6_i32_60 = arith.constant 6 : i32
    %142 = arith.addi %141, %c6_i32_60 : i32
    %143 = arith.index_cast %142 : i32 to index
    %144 = memref.load %arg1[%143] : memref<256xi32, #tpu.memory_space<smem>>
    %145 = arith.index_cast %144 : i32 to index
    %c0_61 = arith.constant 0 : index
    %146 = vector.load %arg2[%145, %c0_61] : memref<512x256xf32, #tpu.memory_space<vmem>>, vector<1x256xf32>
    %c16_i32_62 = arith.constant 16 : i32
    %147 = arith.addi %0, %c16_i32_62 : i32
    %c7_i32_63 = arith.constant 7 : i32
    %148 = arith.addi %147, %c7_i32_63 : i32
    %149 = arith.index_cast %148 : i32 to index
    %150 = memref.load %arg1[%149] : memref<256xi32, #tpu.memory_space<smem>>
    %151 = arith.index_cast %150 : i32 to index
    %c0_64 = arith.constant 0 : index
    %152 = vector.load %arg2[%151, %c0_64] : memref<512x256xf32, #tpu.memory_space<vmem>>, vector<1x256xf32>
    %153 = tpu.concatenate %110, %116, %122, %128, %134, %140, %146, %152 in 0 : vector<1x256xf32>, vector<1x256xf32>, vector<1x256xf32>, vector<1x256xf32>, vector<1x256xf32>, vector<1x256xf32>, vector<1x256xf32>, vector<1x256xf32> -> vector<8x256xf32>
    %cst_65 = arith.constant 1.600000e+01 : f32
    %154 = vector.broadcast %cst_65 : f32 to vector<8x256xf32>
    %155 = arith.mulf %153, %154 : vector<8x256xf32>
    %c16 = arith.constant 16 : index
    %c0_66 = arith.constant 0 : index
    %156 = vector.load %arg3[%c16, %c0_66] : memref<64x256xf32, #tpu.memory_space<vmem>>, vector<8x256xf32>
    tpu.vector_store %arg3[%c16, %c0_66], %155 {strides = array<i32>} : memref<64x256xf32, #tpu.memory_space<vmem>>, vector<8x256xf32>,
    %c24_i32 = arith.constant 24 : i32
    %157 = arith.addi %0, %c24_i32 : i32
    %c0_i32_67 = arith.constant 0 : i32
    %158 = arith.addi %157, %c0_i32_67 : i32
    %159 = arith.index_cast %158 : i32 to index
    %160 = memref.load %arg1[%159] : memref<256xi32, #tpu.memory_space<smem>>
    %161 = arith.index_cast %160 : i32 to index
    %c0_68 = arith.constant 0 : index
    %162 = vector.load %arg2[%161, %c0_68] : memref<512x256xf32, #tpu.memory_space<vmem>>, vector<1x256xf32>
    %c24_i32_69 = arith.constant 24 : i32
    %163 = arith.addi %0, %c24_i32_69 : i32
    %c1_i32_70 = arith.constant 1 : i32
    %164 = arith.addi %163, %c1_i32_70 : i32
    %165 = arith.index_cast %164 : i32 to index
    %166 = memref.load %arg1[%165] : memref<256xi32, #tpu.memory_space<smem>>
    %167 = arith.index_cast %166 : i32 to index
    %c0_71 = arith.constant 0 : index
    %168 = vector.load %arg2[%167, %c0_71] : memref<512x256xf32, #tpu.memory_space<vmem>>, vector<1x256xf32>
    %c24_i32_72 = arith.constant 24 : i32
    %169 = arith.addi %0, %c24_i32_72 : i32
    %c2_i32_73 = arith.constant 2 : i32
    %170 = arith.addi %169, %c2_i32_73 : i32
    %171 = arith.index_cast %170 : i32 to index
    %172 = memref.load %arg1[%171] : memref<256xi32, #tpu.memory_space<smem>>
    %173 = arith.index_cast %172 : i32 to index
    %c0_74 = arith.constant 0 : index
    %174 = vector.load %arg2[%173, %c0_74] : memref<512x256xf32, #tpu.memory_space<vmem>>, vector<1x256xf32>
    %c24_i32_75 = arith.constant 24 : i32
    %175 = arith.addi %0, %c24_i32_75 : i32
    %c3_i32_76 = arith.constant 3 : i32
    %176 = arith.addi %175, %c3_i32_76 : i32
    %177 = arith.index_cast %176 : i32 to index
    %178 = memref.load %arg1[%177] : memref<256xi32, #tpu.memory_space<smem>>
    %179 = arith.index_cast %178 : i32 to index
    %c0_77 = arith.constant 0 : index
    %180 = vector.load %arg2[%179, %c0_77] : memref<512x256xf32, #tpu.memory_space<vmem>>, vector<1x256xf32>
    %c24_i32_78 = arith.constant 24 : i32
    %181 = arith.addi %0, %c24_i32_78 : i32
    %c4_i32_79 = arith.constant 4 : i32
    %182 = arith.addi %181, %c4_i32_79 : i32
    %183 = arith.index_cast %182 : i32 to index
    %184 = memref.load %arg1[%183] : memref<256xi32, #tpu.memory_space<smem>>
    %185 = arith.index_cast %184 : i32 to index
    %c0_80 = arith.constant 0 : index
    %186 = vector.load %arg2[%185, %c0_80] : memref<512x256xf32, #tpu.memory_space<vmem>>, vector<1x256xf32>
    %c24_i32_81 = arith.constant 24 : i32
    %187 = arith.addi %0, %c24_i32_81 : i32
    %c5_i32_82 = arith.constant 5 : i32
    %188 = arith.addi %187, %c5_i32_82 : i32
    %189 = arith.index_cast %188 : i32 to index
    %190 = memref.load %arg1[%189] : memref<256xi32, #tpu.memory_space<smem>>
    %191 = arith.index_cast %190 : i32 to index
    %c0_83 = arith.constant 0 : index
    %192 = vector.load %arg2[%191, %c0_83] : memref<512x256xf32, #tpu.memory_space<vmem>>, vector<1x256xf32>
    %c24_i32_84 = arith.constant 24 : i32
    %193 = arith.addi %0, %c24_i32_84 : i32
    %c6_i32_85 = arith.constant 6 : i32
    %194 = arith.addi %193, %c6_i32_85 : i32
    %195 = arith.index_cast %194 : i32 to index
    %196 = memref.load %arg1[%195] : memref<256xi32, #tpu.memory_space<smem>>
    %197 = arith.index_cast %196 : i32 to index
    %c0_86 = arith.constant 0 : index
    %198 = vector.load %arg2[%197, %c0_86] : memref<512x256xf32, #tpu.memory_space<vmem>>, vector<1x256xf32>
    %c24_i32_87 = arith.constant 24 : i32
    %199 = arith.addi %0, %c24_i32_87 : i32
    %c7_i32_88 = arith.constant 7 : i32
    %200 = arith.addi %199, %c7_i32_88 : i32
    %201 = arith.index_cast %200 : i32 to index
    %202 = memref.load %arg1[%201] : memref<256xi32, #tpu.memory_space<smem>>
    %203 = arith.index_cast %202 : i32 to index
    %c0_89 = arith.constant 0 : index
    %204 = vector.load %arg2[%203, %c0_89] : memref<512x256xf32, #tpu.memory_space<vmem>>, vector<1x256xf32>
    %205 = tpu.concatenate %162, %168, %174, %180, %186, %192, %198, %204 in 0 : vector<1x256xf32>, vector<1x256xf32>, vector<1x256xf32>, vector<1x256xf32>, vector<1x256xf32>, vector<1x256xf32>, vector<1x256xf32>, vector<1x256xf32> -> vector<8x256xf32>
    %cst_90 = arith.constant 1.600000e+01 : f32
    %206 = vector.broadcast %cst_90 : f32 to vector<8x256xf32>
    %207 = arith.mulf %205, %206 : vector<8x256xf32>
    %c24 = arith.constant 24 : index
    %c0_91 = arith.constant 0 : index
    %208 = vector.load %arg3[%c24, %c0_91] : memref<64x256xf32, #tpu.memory_space<vmem>>, vector<8x256xf32>
    tpu.vector_store %arg3[%c24, %c0_91], %207 {strides = array<i32>} : memref<64x256xf32, #tpu.memory_space<vmem>>, vector<8x256xf32>,
    %c32_i32 = arith.constant 32 : i32
    %209 = arith.addi %0, %c32_i32 : i32
    %c0_i32_92 = arith.constant 0 : i32
    %210 = arith.addi %209, %c0_i32_92 : i32
    %211 = arith.index_cast %210 : i32 to index
    %212 = memref.load %arg1[%211] : memref<256xi32, #tpu.memory_space<smem>>
    %213 = arith.index_cast %212 : i32 to index
    %c0_93 = arith.constant 0 : index
    %214 = vector.load %arg2[%213, %c0_93] : memref<512x256xf32, #tpu.memory_space<vmem>>, vector<1x256xf32>
    %c32_i32_94 = arith.constant 32 : i32
    %215 = arith.addi %0, %c32_i32_94 : i32
    %c1_i32_95 = arith.constant 1 : i32
    %216 = arith.addi %215, %c1_i32_95 : i32
    %217 = arith.index_cast %216 : i32 to index
    %218 = memref.load %arg1[%217] : memref<256xi32, #tpu.memory_space<smem>>
    %219 = arith.index_cast %218 : i32 to index
    %c0_96 = arith.constant 0 : index
    %220 = vector.load %arg2[%219, %c0_96] : memref<512x256xf32, #tpu.memory_space<vmem>>, vector<1x256xf32>
    %c32_i32_97 = arith.constant 32 : i32
    %221 = arith.addi %0, %c32_i32_97 : i32
    %c2_i32_98 = arith.constant 2 : i32
    %222 = arith.addi %221, %c2_i32_98 : i32
    %223 = arith.index_cast %222 : i32 to index
    %224 = memref.load %arg1[%223] : memref<256xi32, #tpu.memory_space<smem>>
    %225 = arith.index_cast %224 : i32 to index
    %c0_99 = arith.constant 0 : index
    %226 = vector.load %arg2[%225, %c0_99] : memref<512x256xf32, #tpu.memory_space<vmem>>, vector<1x256xf32>
    %c32_i32_100 = arith.constant 32 : i32
    %227 = arith.addi %0, %c32_i32_100 : i32
    %c3_i32_101 = arith.constant 3 : i32
    %228 = arith.addi %227, %c3_i32_101 : i32
    %229 = arith.index_cast %228 : i32 to index
    %230 = memref.load %arg1[%229] : memref<256xi32, #tpu.memory_space<smem>>
    %231 = arith.index_cast %230 : i32 to index
    %c0_102 = arith.constant 0 : index
    %232 = vector.load %arg2[%231, %c0_102] : memref<512x256xf32, #tpu.memory_space<vmem>>, vector<1x256xf32>
    %c32_i32_103 = arith.constant 32 : i32
    %233 = arith.addi %0, %c32_i32_103 : i32
    %c4_i32_104 = arith.constant 4 : i32
    %234 = arith.addi %233, %c4_i32_104 : i32
    %235 = arith.index_cast %234 : i32 to index
    %236 = memref.load %arg1[%235] : memref<256xi32, #tpu.memory_space<smem>>
    %237 = arith.index_cast %236 : i32 to index
    %c0_105 = arith.constant 0 : index
    %238 = vector.load %arg2[%237, %c0_105] : memref<512x256xf32, #tpu.memory_space<vmem>>, vector<1x256xf32>
    %c32_i32_106 = arith.constant 32 : i32
    %239 = arith.addi %0, %c32_i32_106 : i32
    %c5_i32_107 = arith.constant 5 : i32
    %240 = arith.addi %239, %c5_i32_107 : i32
    %241 = arith.index_cast %240 : i32 to index
    %242 = memref.load %arg1[%241] : memref<256xi32, #tpu.memory_space<smem>>
    %243 = arith.index_cast %242 : i32 to index
    %c0_108 = arith.constant 0 : index
    %244 = vector.load %arg2[%243, %c0_108] : memref<512x256xf32, #tpu.memory_space<vmem>>, vector<1x256xf32>
    %c32_i32_109 = arith.constant 32 : i32
    %245 = arith.addi %0, %c32_i32_109 : i32
    %c6_i32_110 = arith.constant 6 : i32
    %246 = arith.addi %245, %c6_i32_110 : i32
    %247 = arith.index_cast %246 : i32 to index
    %248 = memref.load %arg1[%247] : memref<256xi32, #tpu.memory_space<smem>>
    %249 = arith.index_cast %248 : i32 to index
    %c0_111 = arith.constant 0 : index
    %250 = vector.load %arg2[%249, %c0_111] : memref<512x256xf32, #tpu.memory_space<vmem>>, vector<1x256xf32>
    %c32_i32_112 = arith.constant 32 : i32
    %251 = arith.addi %0, %c32_i32_112 : i32
    %c7_i32_113 = arith.constant 7 : i32
    %252 = arith.addi %251, %c7_i32_113 : i32
    %253 = arith.index_cast %252 : i32 to index
    %254 = memref.load %arg1[%253] : memref<256xi32, #tpu.memory_space<smem>>
    %255 = arith.index_cast %254 : i32 to index
    %c0_114 = arith.constant 0 : index
    %256 = vector.load %arg2[%255, %c0_114] : memref<512x256xf32, #tpu.memory_space<vmem>>, vector<1x256xf32>
    %257 = tpu.concatenate %214, %220, %226, %232, %238, %244, %250, %256 in 0 : vector<1x256xf32>, vector<1x256xf32>, vector<1x256xf32>, vector<1x256xf32>, vector<1x256xf32>, vector<1x256xf32>, vector<1x256xf32>, vector<1x256xf32> -> vector<8x256xf32>
    %cst_115 = arith.constant 1.600000e+01 : f32
    %258 = vector.broadcast %cst_115 : f32 to vector<8x256xf32>
    %259 = arith.mulf %257, %258 : vector<8x256xf32>
    %c32 = arith.constant 32 : index
    %c0_116 = arith.constant 0 : index
    %260 = vector.load %arg3[%c32, %c0_116] : memref<64x256xf32, #tpu.memory_space<vmem>>, vector<8x256xf32>
    tpu.vector_store %arg3[%c32, %c0_116], %259 {strides = array<i32>} : memref<64x256xf32, #tpu.memory_space<vmem>>, vector<8x256xf32>,
    %c40_i32 = arith.constant 40 : i32
    %261 = arith.addi %0, %c40_i32 : i32
    %c0_i32_117 = arith.constant 0 : i32
    %262 = arith.addi %261, %c0_i32_117 : i32
    %263 = arith.index_cast %262 : i32 to index
    %264 = memref.load %arg1[%263] : memref<256xi32, #tpu.memory_space<smem>>
    %265 = arith.index_cast %264 : i32 to index
    %c0_118 = arith.constant 0 : index
    %266 = vector.load %arg2[%265, %c0_118] : memref<512x256xf32, #tpu.memory_space<vmem>>, vector<1x256xf32>
    %c40_i32_119 = arith.constant 40 : i32
    %267 = arith.addi %0, %c40_i32_119 : i32
    %c1_i32_120 = arith.constant 1 : i32
    %268 = arith.addi %267, %c1_i32_120 : i32
    %269 = arith.index_cast %268 : i32 to index
    %270 = memref.load %arg1[%269] : memref<256xi32, #tpu.memory_space<smem>>
    %271 = arith.index_cast %270 : i32 to index
    %c0_121 = arith.constant 0 : index
    %272 = vector.load %arg2[%271, %c0_121] : memref<512x256xf32, #tpu.memory_space<vmem>>, vector<1x256xf32>
    %c40_i32_122 = arith.constant 40 : i32
    %273 = arith.addi %0, %c40_i32_122 : i32
    %c2_i32_123 = arith.constant 2 : i32
    %274 = arith.addi %273, %c2_i32_123 : i32
    %275 = arith.index_cast %274 : i32 to index
    %276 = memref.load %arg1[%275] : memref<256xi32, #tpu.memory_space<smem>>
    %277 = arith.index_cast %276 : i32 to index
    %c0_124 = arith.constant 0 : index
    %278 = vector.load %arg2[%277, %c0_124] : memref<512x256xf32, #tpu.memory_space<vmem>>, vector<1x256xf32>
    %c40_i32_125 = arith.constant 40 : i32
    %279 = arith.addi %0, %c40_i32_125 : i32
    %c3_i32_126 = arith.constant 3 : i32
    %280 = arith.addi %279, %c3_i32_126 : i32
    %281 = arith.index_cast %280 : i32 to index
    %282 = memref.load %arg1[%281] : memref<256xi32, #tpu.memory_space<smem>>
    %283 = arith.index_cast %282 : i32 to index
    %c0_127 = arith.constant 0 : index
    %284 = vector.load %arg2[%283, %c0_127] : memref<512x256xf32, #tpu.memory_space<vmem>>, vector<1x256xf32>
    %c40_i32_128 = arith.constant 40 : i32
    %285 = arith.addi %0, %c40_i32_128 : i32
    %c4_i32_129 = arith.constant 4 : i32
    %286 = arith.addi %285, %c4_i32_129 : i32
    %287 = arith.index_cast %286 : i32 to index
    %288 = memref.load %arg1[%287] : memref<256xi32, #tpu.memory_space<smem>>
    %289 = arith.index_cast %288 : i32 to index
    %c0_130 = arith.constant 0 : index
    %290 = vector.load %arg2[%289, %c0_130] : memref<512x256xf32, #tpu.memory_space<vmem>>, vector<1x256xf32>
    %c40_i32_131 = arith.constant 40 : i32
    %291 = arith.addi %0, %c40_i32_131 : i32
    %c5_i32_132 = arith.constant 5 : i32
    %292 = arith.addi %291, %c5_i32_132 : i32
    %293 = arith.index_cast %292 : i32 to index
    %294 = memref.load %arg1[%293] : memref<256xi32, #tpu.memory_space<smem>>
    %295 = arith.index_cast %294 : i32 to index
    %c0_133 = arith.constant 0 : index
    %296 = vector.load %arg2[%295, %c0_133] : memref<512x256xf32, #tpu.memory_space<vmem>>, vector<1x256xf32>
    %c40_i32_134 = arith.constant 40 : i32
    %297 = arith.addi %0, %c40_i32_134 : i32
    %c6_i32_135 = arith.constant 6 : i32
    %298 = arith.addi %297, %c6_i32_135 : i32
    %299 = arith.index_cast %298 : i32 to index
    %300 = memref.load %arg1[%299] : memref<256xi32, #tpu.memory_space<smem>>
    %301 = arith.index_cast %300 : i32 to index
    %c0_136 = arith.constant 0 : index
    %302 = vector.load %arg2[%301, %c0_136] : memref<512x256xf32, #tpu.memory_space<vmem>>, vector<1x256xf32>
    %c40_i32_137 = arith.constant 40 : i32
    %303 = arith.addi %0, %c40_i32_137 : i32
    %c7_i32_138 = arith.constant 7 : i32
    %304 = arith.addi %303, %c7_i32_138 : i32
    %305 = arith.index_cast %304 : i32 to index
    %306 = memref.load %arg1[%305] : memref<256xi32, #tpu.memory_space<smem>>
    %307 = arith.index_cast %306 : i32 to index
    %c0_139 = arith.constant 0 : index
    %308 = vector.load %arg2[%307, %c0_139] : memref<512x256xf32, #tpu.memory_space<vmem>>, vector<1x256xf32>
    %309 = tpu.concatenate %266, %272, %278, %284, %290, %296, %302, %308 in 0 : vector<1x256xf32>, vector<1x256xf32>, vector<1x256xf32>, vector<1x256xf32>, vector<1x256xf32>, vector<1x256xf32>, vector<1x256xf32>, vector<1x256xf32> -> vector<8x256xf32>
    %cst_140 = arith.constant 1.600000e+01 : f32
    %310 = vector.broadcast %cst_140 : f32 to vector<8x256xf32>
    %311 = arith.mulf %309, %310 : vector<8x256xf32>
    %c40 = arith.constant 40 : index
    %c0_141 = arith.constant 0 : index
    %312 = vector.load %arg3[%c40, %c0_141] : memref<64x256xf32, #tpu.memory_space<vmem>>, vector<8x256xf32>
    tpu.vector_store %arg3[%c40, %c0_141], %311 {strides = array<i32>} : memref<64x256xf32, #tpu.memory_space<vmem>>, vector<8x256xf32>,
    %c48_i32 = arith.constant 48 : i32
    %313 = arith.addi %0, %c48_i32 : i32
    %c0_i32_142 = arith.constant 0 : i32
    %314 = arith.addi %313, %c0_i32_142 : i32
    %315 = arith.index_cast %314 : i32 to index
    %316 = memref.load %arg1[%315] : memref<256xi32, #tpu.memory_space<smem>>
    %317 = arith.index_cast %316 : i32 to index
    %c0_143 = arith.constant 0 : index
    %318 = vector.load %arg2[%317, %c0_143] : memref<512x256xf32, #tpu.memory_space<vmem>>, vector<1x256xf32>
    %c48_i32_144 = arith.constant 48 : i32
    %319 = arith.addi %0, %c48_i32_144 : i32
    %c1_i32_145 = arith.constant 1 : i32
    %320 = arith.addi %319, %c1_i32_145 : i32
    %321 = arith.index_cast %320 : i32 to index
    %322 = memref.load %arg1[%321] : memref<256xi32, #tpu.memory_space<smem>>
    %323 = arith.index_cast %322 : i32 to index
    %c0_146 = arith.constant 0 : index
    %324 = vector.load %arg2[%323, %c0_146] : memref<512x256xf32, #tpu.memory_space<vmem>>, vector<1x256xf32>
    %c48_i32_147 = arith.constant 48 : i32
    %325 = arith.addi %0, %c48_i32_147 : i32
    %c2_i32_148 = arith.constant 2 : i32
    %326 = arith.addi %325, %c2_i32_148 : i32
    %327 = arith.index_cast %326 : i32 to index
    %328 = memref.load %arg1[%327] : memref<256xi32, #tpu.memory_space<smem>>
    %329 = arith.index_cast %328 : i32 to index
    %c0_149 = arith.constant 0 : index
    %330 = vector.load %arg2[%329, %c0_149] : memref<512x256xf32, #tpu.memory_space<vmem>>, vector<1x256xf32>
    %c48_i32_150 = arith.constant 48 : i32
    %331 = arith.addi %0, %c48_i32_150 : i32
    %c3_i32_151 = arith.constant 3 : i32
    %332 = arith.addi %331, %c3_i32_151 : i32
    %333 = arith.index_cast %332 : i32 to index
    %334 = memref.load %arg1[%333] : memref<256xi32, #tpu.memory_space<smem>>
    %335 = arith.index_cast %334 : i32 to index
    %c0_152 = arith.constant 0 : index
    %336 = vector.load %arg2[%335, %c0_152] : memref<512x256xf32, #tpu.memory_space<vmem>>, vector<1x256xf32>
    %c48_i32_153 = arith.constant 48 : i32
    %337 = arith.addi %0, %c48_i32_153 : i32
    %c4_i32_154 = arith.constant 4 : i32
    %338 = arith.addi %337, %c4_i32_154 : i32
    %339 = arith.index_cast %338 : i32 to index
    %340 = memref.load %arg1[%339] : memref<256xi32, #tpu.memory_space<smem>>
    %341 = arith.index_cast %340 : i32 to index
    %c0_155 = arith.constant 0 : index
    %342 = vector.load %arg2[%341, %c0_155] : memref<512x256xf32, #tpu.memory_space<vmem>>, vector<1x256xf32>
    %c48_i32_156 = arith.constant 48 : i32
    %343 = arith.addi %0, %c48_i32_156 : i32
    %c5_i32_157 = arith.constant 5 : i32
    %344 = arith.addi %343, %c5_i32_157 : i32
    %345 = arith.index_cast %344 : i32 to index
    %346 = memref.load %arg1[%345] : memref<256xi32, #tpu.memory_space<smem>>
    %347 = arith.index_cast %346 : i32 to index
    %c0_158 = arith.constant 0 : index
    %348 = vector.load %arg2[%347, %c0_158] : memref<512x256xf32, #tpu.memory_space<vmem>>, vector<1x256xf32>
    %c48_i32_159 = arith.constant 48 : i32
    %349 = arith.addi %0, %c48_i32_159 : i32
    %c6_i32_160 = arith.constant 6 : i32
    %350 = arith.addi %349, %c6_i32_160 : i32
    %351 = arith.index_cast %350 : i32 to index
    %352 = memref.load %arg1[%351] : memref<256xi32, #tpu.memory_space<smem>>
    %353 = arith.index_cast %352 : i32 to index
    %c0_161 = arith.constant 0 : index
    %354 = vector.load %arg2[%353, %c0_161] : memref<512x256xf32, #tpu.memory_space<vmem>>, vector<1x256xf32>
    %c48_i32_162 = arith.constant 48 : i32
    %355 = arith.addi %0, %c48_i32_162 : i32
    %c7_i32_163 = arith.constant 7 : i32
    %356 = arith.addi %355, %c7_i32_163 : i32
    %357 = arith.index_cast %356 : i32 to index
    %358 = memref.load %arg1[%357] : memref<256xi32, #tpu.memory_space<smem>>
    %359 = arith.index_cast %358 : i32 to index
    %c0_164 = arith.constant 0 : index
    %360 = vector.load %arg2[%359, %c0_164] : memref<512x256xf32, #tpu.memory_space<vmem>>, vector<1x256xf32>
    %361 = tpu.concatenate %318, %324, %330, %336, %342, %348, %354, %360 in 0 : vector<1x256xf32>, vector<1x256xf32>, vector<1x256xf32>, vector<1x256xf32>, vector<1x256xf32>, vector<1x256xf32>, vector<1x256xf32>, vector<1x256xf32> -> vector<8x256xf32>
    %cst_165 = arith.constant 1.600000e+01 : f32
    %362 = vector.broadcast %cst_165 : f32 to vector<8x256xf32>
    %363 = arith.mulf %361, %362 : vector<8x256xf32>
    %c48 = arith.constant 48 : index
    %c0_166 = arith.constant 0 : index
    %364 = vector.load %arg3[%c48, %c0_166] : memref<64x256xf32, #tpu.memory_space<vmem>>, vector<8x256xf32>
    tpu.vector_store %arg3[%c48, %c0_166], %363 {strides = array<i32>} : memref<64x256xf32, #tpu.memory_space<vmem>>, vector<8x256xf32>,
    %c56_i32 = arith.constant 56 : i32
    %365 = arith.addi %0, %c56_i32 : i32
    %c0_i32_167 = arith.constant 0 : i32
    %366 = arith.addi %365, %c0_i32_167 : i32
    %367 = arith.index_cast %366 : i32 to index
    %368 = memref.load %arg1[%367] : memref<256xi32, #tpu.memory_space<smem>>
    %369 = arith.index_cast %368 : i32 to index
    %c0_168 = arith.constant 0 : index
    %370 = vector.load %arg2[%369, %c0_168] : memref<512x256xf32, #tpu.memory_space<vmem>>, vector<1x256xf32>
    %c56_i32_169 = arith.constant 56 : i32
    %371 = arith.addi %0, %c56_i32_169 : i32
    %c1_i32_170 = arith.constant 1 : i32
    %372 = arith.addi %371, %c1_i32_170 : i32
    %373 = arith.index_cast %372 : i32 to index
    %374 = memref.load %arg1[%373] : memref<256xi32, #tpu.memory_space<smem>>
    %375 = arith.index_cast %374 : i32 to index
    %c0_171 = arith.constant 0 : index
    %376 = vector.load %arg2[%375, %c0_171] : memref<512x256xf32, #tpu.memory_space<vmem>>, vector<1x256xf32>
    %c56_i32_172 = arith.constant 56 : i32
    %377 = arith.addi %0, %c56_i32_172 : i32
    %c2_i32_173 = arith.constant 2 : i32
    %378 = arith.addi %377, %c2_i32_173 : i32
    %379 = arith.index_cast %378 : i32 to index
    %380 = memref.load %arg1[%379] : memref<256xi32, #tpu.memory_space<smem>>
    %381 = arith.index_cast %380 : i32 to index
    %c0_174 = arith.constant 0 : index
    %382 = vector.load %arg2[%381, %c0_174] : memref<512x256xf32, #tpu.memory_space<vmem>>, vector<1x256xf32>
    %c56_i32_175 = arith.constant 56 : i32
    %383 = arith.addi %0, %c56_i32_175 : i32
    %c3_i32_176 = arith.constant 3 : i32
    %384 = arith.addi %383, %c3_i32_176 : i32
    %385 = arith.index_cast %384 : i32 to index
    %386 = memref.load %arg1[%385] : memref<256xi32, #tpu.memory_space<smem>>
    %387 = arith.index_cast %386 : i32 to index
    %c0_177 = arith.constant 0 : index
    %388 = vector.load %arg2[%387, %c0_177] : memref<512x256xf32, #tpu.memory_space<vmem>>, vector<1x256xf32>
    %c56_i32_178 = arith.constant 56 : i32
    %389 = arith.addi %0, %c56_i32_178 : i32
    %c4_i32_179 = arith.constant 4 : i32
    %390 = arith.addi %389, %c4_i32_179 : i32
    %391 = arith.index_cast %390 : i32 to index
    %392 = memref.load %arg1[%391] : memref<256xi32, #tpu.memory_space<smem>>
    %393 = arith.index_cast %392 : i32 to index
    %c0_180 = arith.constant 0 : index
    %394 = vector.load %arg2[%393, %c0_180] : memref<512x256xf32, #tpu.memory_space<vmem>>, vector<1x256xf32>
    %c56_i32_181 = arith.constant 56 : i32
    %395 = arith.addi %0, %c56_i32_181 : i32
    %c5_i32_182 = arith.constant 5 : i32
    %396 = arith.addi %395, %c5_i32_182 : i32
    %397 = arith.index_cast %396 : i32 to index
    %398 = memref.load %arg1[%397] : memref<256xi32, #tpu.memory_space<smem>>
    %399 = arith.index_cast %398 : i32 to index
    %c0_183 = arith.constant 0 : index
    %400 = vector.load %arg2[%399, %c0_183] : memref<512x256xf32, #tpu.memory_space<vmem>>, vector<1x256xf32>
    %c56_i32_184 = arith.constant 56 : i32
    %401 = arith.addi %0, %c56_i32_184 : i32
    %c6_i32_185 = arith.constant 6 : i32
    %402 = arith.addi %401, %c6_i32_185 : i32
    %403 = arith.index_cast %402 : i32 to index
    %404 = memref.load %arg1[%403] : memref<256xi32, #tpu.memory_space<smem>>
    %405 = arith.index_cast %404 : i32 to index
    %c0_186 = arith.constant 0 : index
    %406 = vector.load %arg2[%405, %c0_186] : memref<512x256xf32, #tpu.memory_space<vmem>>, vector<1x256xf32>
    %c56_i32_187 = arith.constant 56 : i32
    %407 = arith.addi %0, %c56_i32_187 : i32
    %c7_i32_188 = arith.constant 7 : i32
    %408 = arith.addi %407, %c7_i32_188 : i32
    %409 = arith.index_cast %408 : i32 to index
    %410 = memref.load %arg1[%409] : memref<256xi32, #tpu.memory_space<smem>>
    %411 = arith.index_cast %410 : i32 to index
    %c0_189 = arith.constant 0 : index
    %412 = vector.load %arg2[%411, %c0_189] : memref<512x256xf32, #tpu.memory_space<vmem>>, vector<1x256xf32>
    %413 = tpu.concatenate %370, %376, %382, %388, %394, %400, %406, %412 in 0 : vector<1x256xf32>, vector<1x256xf32>, vector<1x256xf32>, vector<1x256xf32>, vector<1x256xf32>, vector<1x256xf32>, vector<1x256xf32>, vector<1x256xf32> -> vector<8x256xf32>
    %cst_190 = arith.constant 1.600000e+01 : f32
    %414 = vector.broadcast %cst_190 : f32 to vector<8x256xf32>
    %415 = arith.mulf %413, %414 : vector<8x256xf32>
    %c56 = arith.constant 56 : index
    %c0_191 = arith.constant 0 : index
    %416 = vector.load %arg3[%c56, %c0_191] : memref<64x256xf32, #tpu.memory_space<vmem>>, vector<8x256xf32>
    tpu.vector_store %arg3[%c56, %c0_191], %415 {strides = array<i32>} : memref<64x256xf32, #tpu.memory_space<vmem>>, vector<8x256xf32>,
    return
  }
  func.func @transform_0(%arg0: i32, %arg1: memref<256xi32, #tpu.memory_space<smem>>) -> (i32, i32) {
    %c0_i32 = arith.constant 0 : i32
    %c0_i32_0 = arith.constant 0 : i32
    %c0_i32_1 = arith.constant 0 : i32
    return %c0_i32, %c0_i32_0 : i32, i32
  }
  func.func @transform_1(%arg0: i32, %arg1: memref<256xi32, #tpu.memory_space<smem>>) -> (i32, i32) {
    %c0_i32 = arith.constant 0 : i32
    %c0_i32_0 = arith.constant 0 : i32
    return %arg0, %c0_i32 : i32, i32
  }
}

</mosaic_0001>

<llo_original>
// kernel: tpu_custom_call.1
$region0: #{tpu_custom_call.1}
  #allocation0 [shape = 'u32[]', space=smem, size = 0x4, offset = 0x4, fixed_abs, tag = 'smem constant byte address 0x4 - core index']
  #allocation1 [shape = 'u32[144,128]{1,0:T(1,128)}', space=vmem, size = 0x12000, scoped, tag = 'internal scratch']
  #allocation2 [shape = 's32[1]{0}', space=sflag, size = 0x4, scoped, tag = 'scoped memory for tpu_custom_call.1']
  #allocation3 [shape = 'u8[1024]{0}', space=smem, size = 0x400, scoped, tag = 'prefetched SMEM operand 0']
  %s0 = inlined_call_operand.hbm [shape: s32[256], index: 0, kind: input, shape index: {}]
  %s1 = inlined_call_operand.hbm [shape: f32[512,256], index: 1, kind: input, shape index: {}]
  %s2 = inlined_call_operand.hbm [shape: f32[256,256], index: 2, kind: output, shape index: {}]
  %s3 = sld [smem:[#allocation0]]
  $region41: #{tpu_custom_call.1} parent=0
    _
  %s5 = ssub.s32 1, %s3
  %s6 = scalar_select 0, %s5, %s3
  %8 = dma.hbm_to_smem %s0, 32, [#allocation3], [#allocation2]
  %9 = dma.done [#allocation2], 32
  %10 = sfence
  $region1: #{tpu_custom_call.1} parent=0
    #allocation4 [shape = 'u8[524288]{0}', space=vmem, size = 0x80000, scoped, tag = 'input window, operand 1, single buffered']
    #allocation5 [shape = 's32[2]{0}', space=sflag, size = 0x8, scoped, tag = 'scoped memory for tpu_custom_call.1']
    #allocation6 [shape = 's32[2]{0}', space=sflag, size = 0x8, scoped, tag = 'scoped memory for tpu_custom_call.1']
    #allocation7 [shape = 'u8[131072]{0}', space=vmem, size = 0x20000, scoped, tag = 'output window, operand 0']
    %11 = vsyncpa [#allocation5], 0
    %12 = vsyncpa [#allocation6], 0
    %s13 = scalar_lea.sflag [#allocation6], 1
    %14 = vsyncpa %s13, 0
    loop: start=0, step=1, limit=6
    $region2: #{tpu_custom_call.1} parent=1 // loop_pre_header
      _
    $region3: #{tpu_custom_call.1} parent=1 // loop_header
      %s16 = sphi 0, %s20
      %p17 = scmp.ge.s32.totalorder %s16, 6
      %s24 = sphi 0, %s24
      %s26 = sphi 0, %s24
      %s27 = sphi 0, %s26
      %s41 = sphi 0, %s27
      %s47 = sphi 0, %s49
      %s50 = sphi 0, %s47
      %s51 = sphi 0, %s50
      %s67 = sphi 0, %s51
    $region4: #{tpu_custom_call.1} parent=1 // loop_header_branch
      %19 = sbr.rel (%p17) target = $region8
    $region5: #{tpu_custom_call.1} parent=1 // loop_body
      %s21 = ssub.s32 %s16, 1
      %s22 = ssub.s32 %s16, 2
      %s23 = sadd.s32 %s16, 1
      %s25 = sadd.s32 %s24, 1
      %p28 = scmp.eq.s32.totalorder %s16, 3
      %p29 = scmp.ne.s32.totalorder %s24, %s26
      %p30 = scmp.eq.s32.totalorder %s16, 0
      %p31 = por %p29, %p30
      %p32 = scmp.ne.s32.totalorder %s24, %s26
      %p33 = scmp.eq.s32.totalorder %s21, 3
      %p34 = por %p32, %p33
      %p35 = scmp.ne.s32.totalorder %s26, %s27
      %p36 = scmp.eq.s32.totalorder %s21, 0
      %p37 = por %p35, %p36
      %p38 = scmp.ne.s32.totalorder %s26, %s27
      %p39 = scmp.eq.s32.totalorder %s22, 3
      %p40 = por %p38, %p39
      %p42 = scmp.ne.s32.totalorder %s27, %s41
      %p43 = scmp.eq.s32.totalorder %s22, 0
      %p44 = por %p42, %p43
      %s45 = ssub.s32 %s16, %s23
      %p46 = scmp.eq.s32.totalorder %s45, 0
      %s48 = sadd.s32 %s47, 1
      %s49 = scalar_select %p46, %s47, %s48
      %p52 = pneg %p46
      %p53 = scmp.eq.s32.totalorder %s16, 3
      %p54 = por %p52, %p53
      %p55 = scmp.ne.s32.totalorder %s47, %s50
      %p56 = scmp.eq.s32.totalorder %s16, 0
      %p57 = por %p55, %p56
      %p58 = scmp.ne.s32.totalorder %s47, %s50
      %p59 = scmp.eq.s32.totalorder %s21, 3
      %p60 = por %p58, %p59
      %p61 = scmp.ne.s32.totalorder %s50, %s51
      %p62 = scmp.eq.s32.totalorder %s21, 0
      %p63 = por %p61, %p62
      %p64 = scmp.ne.s32.totalorder %s50, %s51
      %p65 = scmp.eq.s32.totalorder %s22, 3
      %p66 = por %p64, %p65
      %p68 = scmp.ne.s32.totalorder %s51, %s67
      %p69 = scmp.eq.s32.totalorder %s22, 0
      %p70 = por %p68, %p69
      %p71 = scmp.le.s32.totalorder 1, %s16
      %p72 = scmp.lt.s32.totalorder %s16, 5
      %p73 = pnand %p71, %p72
      %p74 = pneg %p73
      // Predicated region
      $region9: #{tpu_custom_call.1} parent=5 // pred_check
        _
      $region10: #{tpu_custom_call.1} parent=5 // pred_check_branch
        %76 = sbr.rel (%p73) target = $region12
      $region11: #{tpu_custom_call.1} parent=5 // pred_region
        %s77 = ssub.s32 %s16, 1
        // Predicated region
        $region13: #{tpu_custom_call.1} parent=11 // pred_check
          %p78 = pneg %p37
        $region14: #{tpu_custom_call.1} parent=11 // pred_check_branch
          %80 = sbr.rel (%p78) target = $region16
        $region15: #{tpu_custom_call.1} parent=11 // pred_region
          %s82 = ssub.s32 16384, 16384
          %83 = vsyncadd [#allocation5], %s82
          %s84 = sshll.u32 [#allocation4], 4
          %s85 = int_to_ptr.vmem [resolvable:$true] %s84
          %90 = dma.hbm_to_vmem [thread:$0]  %s1, 16384, %s85, [#allocation5], 256, 256, 16
        $region16: #{tpu_custom_call.1} parent=11 // pred_fallthru
          _
      $region12: #{tpu_custom_call.1} parent=5 // pred_fallthru
        _
      %p91 = scmp.lt.s32.totalorder %s16, 4
      // Predicated region
      $region17: #{tpu_custom_call.1} parent=5 // pred_check
        %p92 = pneg %p91
      $region18: #{tpu_custom_call.1} parent=5 // pred_check_branch
        %94 = sbr.rel (%p92) target = $region20
      $region19: #{tpu_custom_call.1} parent=5 // pred_region
        _
      $region20: #{tpu_custom_call.1} parent=5 // pred_fallthru
        _
      %p95 = scmp.le.s32.totalorder 1, %s16
      %p96 = scmp.lt.s32.totalorder %s16, 5
      %p97 = pnand %p95, %p96
      %p98 = pneg %p97
      // Predicated region
      $region21: #{tpu_custom_call.1} parent=5 // pred_check
        _
      $region22: #{tpu_custom_call.1} parent=5 // pred_check_branch
        %100 = sbr.rel (%p97) target = $region24
      $region23: #{tpu_custom_call.1} parent=5 // pred_region
        %s101 = ssub.s32 %s16, 1
        // Predicated region
        $region25: #{tpu_custom_call.1} parent=23 // pred_check
          %p102 = pneg %p37
        $region26: #{tpu_custom_call.1} parent=23 // pred_check_branch
          %104 = sbr.rel (%p102) target = $region28
        $region27: #{tpu_custom_call.1} parent=23 // pred_region
          %105 = dma.done [#allocation5], 16384
        $region28: #{tpu_custom_call.1} parent=23 // pred_fallthru
          _
        %p106 = pneg %p37
        %p107 = pneg %p34
        %p108 = pneg %p63
        %p109 = pneg %p60
        %s110 = sand.u32 %s50, 1
        %s111 = scalar_lea.sflag [#allocation6], %s110
        %s112 = sand.u32 %s50, 1
        %s113 = smul.addr %s112, 128
        %s114 = scalar_lea.vmem [#allocation7], %s113
        %s115 = smul.u32 8, %s21
        %s116 = smul.u32 %s21, 64
        %s117 = sld [smem:[#allocation3 + %s116]]
        %s118 = sshra.s32 %s117, 3
        %s119 = sand.u32 %s117, 7
        %s120 = sshra.s32 %s117, 3
        %s121 = sand.u32 %s117, 7
        %s122 = smul.u32 %s118, 2
        %s123 = smul.u32 %s122, 8
        %s124 = sadd.s32 %s123, %s121
        %s125 = scalar_lea.vmem [#allocation4], %s124
        %v126 = vld [vmem:[%s125] ss:$8 sm:$0x3]
        %s127 = sadd.s32 %s116, 1
        %s128 = sld [smem:[#allocation3 + %s127]]
        %s129 = sshra.s32 %s128, 3
        %s130 = sand.u32 %s128, 7
        %s131 = sshra.s32 %s128, 3
        %s132 = sand.u32 %s128, 7
        %s133 = smul.u32 %s129, 2
        %s134 = smul.u32 %s133, 8
        %s135 = sadd.s32 %s134, %s132
        %s136 = scalar_lea.vmem [#allocation4], %s135
        %v137 = vld [vmem:[%s136] ss:$8 sm:$0x3]
        %s138 = sadd.s32 %s116, 2
        %s139 = sld [smem:[#allocation3 + %s138]]
        %s140 = sshra.s32 %s139, 3
        %s141 = sand.u32 %s139, 7
        %s142 = sshra.s32 %s139, 3
        %s143 = sand.u32 %s139, 7
        %s144 = smul.u32 %s140, 2
        %s145 = smul.u32 %s144, 8
        %s146 = sadd.s32 %s145, %s143
        %s147 = scalar_lea.vmem [#allocation4], %s146
        %v148 = vld [vmem:[%s147] ss:$8 sm:$0x3]
        %s149 = sadd.s32 %s116, 3
        %s150 = sld [smem:[#allocation3 + %s149]]
        %s151 = sshra.s32 %s150, 3
        %s152 = sand.u32 %s150, 7
        %s153 = sshra.s32 %s150, 3
        %s154 = sand.u32 %s150, 7
        %s155 = smul.u32 %s151, 2
        %s156 = smul.u32 %s155, 8
        %s157 = sadd.s32 %s156, %s154
        %s158 = scalar_lea.vmem [#allocation4], %s157
        %v159 = vld [vmem:[%s158] ss:$8 sm:$0x3]
        %s160 = sadd.s32 %s116, 4
        %s161 = sld [smem:[#allocation3 + %s160]]
        %s162 = sshra.s32 %s161, 3
        %s163 = sand.u32 %s161, 7
        %s164 = sshra.s32 %s161, 3
        %s165 = sand.u32 %s161, 7
        %s166 = smul.u32 %s162, 2
        %s167 = smul.u32 %s166, 8
        %s168 = sadd.s32 %s167, %s165
        %s169 = scalar_lea.vmem [#allocation4], %s168
        %v170 = vld [vmem:[%s169] ss:$8 sm:$0x3]
        %s171 = sadd.s32 %s116, 5
        %s172 = sld [smem:[#allocation3 + %s171]]
        %s173 = sshra.s32 %s172, 3
        %s174 = sand.u32 %s172, 7
        %s175 = sshra.s32 %s172, 3
        %s176 = sand.u32 %s172, 7
        %s177 = smul.u32 %s173, 2
        %s178 = smul.u32 %s177, 8
        %s179 = sadd.s32 %s178, %s176
        %s180 = scalar_lea.vmem [#allocation4], %s179
        %v181 = vld [vmem:[%s180] ss:$8 sm:$0x3]
        %s182 = sadd.s32 %s116, 6
        %s183 = sld [smem:[#allocation3 + %s182]]
        %s184 = sshra.s32 %s183, 3
        %s185 = sand.u32 %s183, 7
        %s186 = sshra.s32 %s183, 3
        %s187 = sand.u32 %s183, 7
        %s188 = smul.u32 %s184, 2
        %s189 = smul.u32 %s188, 8
        %s190 = sadd.s32 %s189, %s187
        %s191 = scalar_lea.vmem [#allocation4], %s190
        %v192 = vld [vmem:[%s191] ss:$8 sm:$0x3]
        %s193 = sadd.s32 %s116, 7
        %s194 = sld [smem:[#allocation3 + %s193]]
        %s195 = sshra.s32 %s194, 3
        %s196 = sand.u32 %s194, 7
        %s197 = sshra.s32 %s194, 3
        %s198 = sand.u32 %s194, 7
        %s199 = smul.u32 %s195, 2
        %s200 = smul.u32 %s199, 8
        %s201 = sadd.s32 %s200, %s198
        %s202 = scalar_lea.vmem [#allocation4], %s201
        %v203 = vld [vmem:[%s202] ss:$8 sm:$0x3]
        %v205 = vlaneseq
        %v206 = vshrl.u32 %v205, 7
        %v207 = vsub.s32 0, %v206
        %v208 = vrot.slane %v126, %v207
        %v209 = vlaneseq
        %v210 = vshrl.u32 %v209, 7
        %v211 = vsub.s32 1, %v210
        %v212 = vrot.slane %v126, %v211
        %v216 = vlaneseq
        %v217 = vshrl.u32 %v216, 7
        %v218 = vsub.s32 0, %v217
        %v219 = vrot.slane %v137, %v218
        %v220 = vlaneseq
        %v221 = vshrl.u32 %v220, 7
        %v222 = vsub.s32 1, %v221
        %v223 = vrot.slane %v137, %v222
        %v227 = vlaneseq
        %v228 = vshrl.u32 %v227, 7
        %v229 = vsub.s32 0, %v228
        %v230 = vrot.slane %v148, %v229
        %v231 = vlaneseq
        %v232 = vshrl.u32 %v231, 7
        %v233 = vsub.s32 1, %v232
        %v234 = vrot.slane %v148, %v233
        %v238 = vlaneseq
        %v239 = vshrl.u32 %v238, 7
        %v240 = vsub.s32 0, %v239
        %v241 = vrot.slane %v159, %v240
        %v242 = vlaneseq
        %v243 = vshrl.u32 %v242, 7
        %v244 = vsub.s32 1, %v243
        %v245 = vrot.slane %v159, %v244
        %v249 = vlaneseq
        %v250 = vshrl.u32 %v249, 7
        %v251 = vsub.s32 0, %v250
        %v252 = vrot.slane %v170, %v251
        %v253 = vlaneseq
        %v254 = vshrl.u32 %v253, 7
        %v255 = vsub.s32 1, %v254
        %v256 = vrot.slane %v170, %v255
        %v260 = vlaneseq
        %v261 = vshrl.u32 %v260, 7
        %v262 = vsub.s32 0, %v261
        %v263 = vrot.slane %v181, %v262
        %v264 = vlaneseq
        %v265 = vshrl.u32 %v264, 7
        %v266 = vsub.s32 1, %v265
        %v267 = vrot.slane %v181, %v266
        %v271 = vlaneseq
        %v272 = vshrl.u32 %v271, 7
        %v273 = vsub.s32 0, %v272
        %v274 = vrot.slane %v192, %v273
        %v275 = vlaneseq
        %v276 = vshrl.u32 %v275, 7
        %v277 = vsub.s32 1, %v276
        %v278 = vrot.slane %v192, %v277
        %v282 = vlaneseq
        %v283 = vshrl.u32 %v282, 7
        %v284 = vsub.s32 0, %v283
        %v285 = vrot.slane %v203, %v284
        %v286 = vlaneseq
        %v287 = vshrl.u32 %v286, 7
        %v288 = vsub.s32 1, %v287
        %v289 = vrot.slane %v203, %v288
        %vm292 = vcmask 1040384
        %v293 = vsel %vm292, %v208, %v219
        %v294 = vsel %vm292, %v212, %v223
        %vm295 = vcmask 1041408
        %v296 = vsel %vm295, %v293, %v230
        %v297 = vsel %vm295, %v294, %v234
        %vm298 = vcmask 1042432
        %v299 = vsel %vm298, %v296, %v241
        %v300 = vsel %vm298, %v297, %v245
        %vm301 = vcmask 1043456
        %v302 = vsel %vm301, %v299, %v252
        %v303 = vsel %vm301, %v300, %v256
        %vm304 = vcmask 1044480
        %v305 = vsel %vm304, %v302, %v263
        %v306 = vsel %vm304, %v303, %v267
        %vm307 = vcmask 1045504
        %v308 = vsel %vm307, %v305, %v274
        %v309 = vsel %vm307, %v306, %v278
        %vm310 = vcmask 1046528
        %v311 = vsel %vm310, %v308, %v285
        %v312 = vsel %vm310, %v309, %v289
        %v313 = vmul.f32 %v311, 16.0
        %v314 = vmul.f32 %v312, 16.0
        %315 = vst [vmem:[%s114] sm:$0xff] %v313
        %316 = vst [vmem:[%s114 + $0x8] sm:$0xff] %v314
        %s317 = sadd.s32 %s116, 8
        %s318 = sld [smem:[#allocation3 + %s317]]
        %s319 = sshra.s32 %s318, 3
        %s320 = sand.u32 %s318, 7
        %s321 = sshra.s32 %s318, 3
        %s322 = sand.u32 %s318, 7
        %s323 = smul.u32 %s319, 2
        %s324 = smul.u32 %s323, 8
        %s325 = sadd.s32 %s324, %s322
        %s326 = scalar_lea.vmem [#allocation4], %s325
        %v327 = vld [vmem:[%s326] ss:$8 sm:$0x3]
        %s328 = sadd.s32 %s116, 9
        %s329 = sld [smem:[#allocation3 + %s328]]
        %s330 = sshra.s32 %s329, 3
        %s331 = sand.u32 %s329, 7
        %s332 = sshra.s32 %s329, 3
        %s333 = sand.u32 %s329, 7
        %s334 = smul.u32 %s330, 2
        %s335 = smul.u32 %s334, 8
        %s336 = sadd.s32 %s335, %s333
        %s337 = scalar_lea.vmem [#allocation4], %s336
        %v338 = vld [vmem:[%s337] ss:$8 sm:$0x3]
        %s339 = sadd.s32 %s116, 10
        %s340 = sld [smem:[#allocation3 + %s339]]
        %s341 = sshra.s32 %s340, 3
        %s342 = sand.u32 %s340, 7
        %s343 = sshra.s32 %s340, 3
        %s344 = sand.u32 %s340, 7
        %s345 = smul.u32 %s341, 2
        %s346 = smul.u32 %s345, 8
        %s347 = sadd.s32 %s346, %s344
        %s348 = scalar_lea.vmem [#allocation4], %s347
        %v349 = vld [vmem:[%s348] ss:$8 sm:$0x3]
        %s350 = sadd.s32 %s116, 11
        %s351 = sld [smem:[#allocation3 + %s350]]
        %s352 = sshra.s32 %s351, 3
        %s353 = sand.u32 %s351, 7
        %s354 = sshra.s32 %s351, 3
        %s355 = sand.u32 %s351, 7
        %s356 = smul.u32 %s352, 2
        %s357 = smul.u32 %s356, 8
        %s358 = sadd.s32 %s357, %s355
        %s359 = scalar_lea.vmem [#allocation4], %s358
        %v360 = vld [vmem:[%s359] ss:$8 sm:$0x3]
        %s361 = sadd.s32 %s116, 12
        %s362 = sld [smem:[#allocation3 + %s361]]
        %s363 = sshra.s32 %s362, 3
        %s364 = sand.u32 %s362, 7
        %s365 = sshra.s32 %s362, 3
        %s366 = sand.u32 %s362, 7
        %s367 = smul.u32 %s363, 2
        %s368 = smul.u32 %s367, 8
        %s369 = sadd.s32 %s368, %s366
        %s370 = scalar_lea.vmem [#allocation4], %s369
        %v371 = vld [vmem:[%s370] ss:$8 sm:$0x3]
        %s372 = sadd.s32 %s116, 13
        %s373 = sld [smem:[#allocation3 + %s372]]
        %s374 = sshra.s32 %s373, 3
        %s375 = sand.u32 %s373, 7
        %s376 = sshra.s32 %s373, 3
        %s377 = sand.u32 %s373, 7
        %s378 = smul.u32 %s374, 2
        %s379 = smul.u32 %s378, 8
        %s380 = sadd.s32 %s379, %s377
        %s381 = scalar_lea.vmem [#allocation4], %s380
        %v382 = vld [vmem:[%s381] ss:$8 sm:$0x3]
        %s383 = sadd.s32 %s116, 14
        %s384 = sld [smem:[#allocation3 + %s383]]
        %s385 = sshra.s32 %s384, 3
        %s386 = sand.u32 %s384, 7
        %s387 = sshra.s32 %s384, 3
        %s388 = sand.u32 %s384, 7
        %s389 = smul.u32 %s385, 2
        %s390 = smul.u32 %s389, 8
        %s391 = sadd.s32 %s390, %s388
        %s392 = scalar_lea.vmem [#allocation4], %s391
        %v393 = vld [vmem:[%s392] ss:$8 sm:$0x3]
        %s394 = sadd.s32 %s116, 15
        %s395 = sld [smem:[#allocation3 + %s394]]
        %s396 = sshra.s32 %s395, 3
        %s397 = sand.u32 %s395, 7
        %s398 = sshra.s32 %s395, 3
        %s399 = sand.u32 %s395, 7
        %s400 = smul.u32 %s396, 2
        %s401 = smul.u32 %s400, 8
        %s402 = sadd.s32 %s401, %s399
        %s403 = scalar_lea.vmem [#allocation4], %s402
        %v404 = vld [vmem:[%s403] ss:$8 sm:$0x3]
        %v406 = vlaneseq
        %v407 = vshrl.u32 %v406, 7
        %v408 = vsub.s32 0, %v407
        %v409 = vrot.slane %v327, %v408
        %v410 = vlaneseq
        %v411 = vshrl.u32 %v410, 7
        %v412 = vsub.s32 1, %v411
        %v413 = vrot.slane %v327, %v412
        %v417 = vlaneseq
        %v418 = vshrl.u32 %v417, 7
        %v419 = vsub.s32 0, %v418
        %v420 = vrot.slane %v338, %v419
        %v421 = vlaneseq
        %v422 = vshrl.u32 %v421, 7
        %v423 = vsub.s32 1, %v422
        %v424 = vrot.slane %v338, %v423
        %v428 = vlaneseq
        %v429 = vshrl.u32 %v428, 7
        %v430 = vsub.s32 0, %v429
        %v431 = vrot.slane %v349, %v430
        %v432 = vlaneseq
        %v433 = vshrl.u32 %v432, 7
        %v434 = vsub.s32 1, %v433
        %v435 = vrot.slane %v349, %v434
        %v439 = vlaneseq
        %v440 = vshrl.u32 %v439, 7
        %v441 = vsub.s32 0, %v440
        %v442 = vrot.slane %v360, %v441
        %v443 = vlaneseq
        %v444 = vshrl.u32 %v443, 7
        %v445 = vsub.s32 1, %v444
        %v446 = vrot.slane %v360, %v445
        %v450 = vlaneseq
        %v451 = vshrl.u32 %v450, 7
        %v452 = vsub.s32 0, %v451
        %v453 = vrot.slane %v371, %v452
        %v454 = vlaneseq
        %v455 = vshrl.u32 %v454, 7
        %v456 = vsub.s32 1, %v455
        %v457 = vrot.slane %v371, %v456
        %v461 = vlaneseq
        %v462 = vshrl.u32 %v461, 7
        %v463 = vsub.s32 0, %v462
        %v464 = vrot.slane %v382, %v463
        %v465 = vlaneseq
        %v466 = vshrl.u32 %v465, 7
        %v467 = vsub.s32 1, %v466
        %v468 = vrot.slane %v382, %v467
        %v472 = vlaneseq
        %v473 = vshrl.u32 %v472, 7
        %v474 = vsub.s32 0, %v473
        %v475 = vrot.slane %v393, %v474
        %v476 = vlaneseq
        %v477 = vshrl.u32 %v476, 7
        %v478 = vsub.s32 1, %v477
        %v479 = vrot.slane %v393, %v478
        %v483 = vlaneseq
        %v484 = vshrl.u32 %v483, 7
        %v485 = vsub.s32 0, %v484
        %v486 = vrot.slane %v404, %v485
        %v487 = vlaneseq
        %v488 = vshrl.u32 %v487, 7
        %v489 = vsub.s32 1, %v488
        %v490 = vrot.slane %v404, %v489
        %v493 = vsel %vm292, %v409, %v420
        %v494 = vsel %vm292, %v413, %v424
        %v495 = vsel %vm295, %v493, %v431
        %v496 = vsel %vm295, %v494, %v435
        %v497 = vsel %vm298, %v495, %v442
        %v498 = vsel %vm298, %v496, %v446
        %v499 = vsel %vm301, %v497, %v453
        %v500 = vsel %vm301, %v498, %v457
        %v501 = vsel %vm304, %v499, %v464
        %v502 = vsel %vm304, %v500, %v468
        %v503 = vsel %vm307, %v501, %v475
        %v504 = vsel %vm307, %v502, %v479
        %v505 = vsel %vm310, %v503, %v486
        %v506 = vsel %vm310, %v504, %v490
        %v507 = vmul.f32 %v505, 16.0
        %v508 = vmul.f32 %v506, 16.0
        %509 = vst [vmem:[%s114 + $0x10] sm:$0xff] %v507
        %510 = vst [vmem:[%s114 + $0x18] sm:$0xff] %v508
        %s511 = sadd.s32 %s116, 16
        %s512 = sld [smem:[#allocation3 + %s511]]
        %s513 = sshra.s32 %s512, 3
        %s514 = sand.u32 %s512, 7
        %s515 = sshra.s32 %s512, 3
        %s516 = sand.u32 %s512, 7
        %s517 = smul.u32 %s513, 2
        %s518 = smul.u32 %s517, 8
        %s519 = sadd.s32 %s518, %s516
        %s520 = scalar_lea.vmem [#allocation4], %s519
        %v521 = vld [vmem:[%s520] ss:$8 sm:$0x3]
        %s522 = sadd.s32 %s116, 17
        %s523 = sld [smem:[#allocation3 + %s522]]
        %s524 = sshra.s32 %s523, 3
        %s525 = sand.u32 %s523, 7
        %s526 = sshra.s32 %s523, 3
        %s527 = sand.u32 %s523, 7
        %s528 = smul.u32 %s524, 2
        %s529 = smul.u32 %s528, 8
        %s530 = sadd.s32 %s529, %s527
        %s531 = scalar_lea.vmem [#allocation4], %s530
        %v532 = vld [vmem:[%s531] ss:$8 sm:$0x3]
        %s533 = sadd.s32 %s116, 18
        %s534 = sld [smem:[#allocation3 + %s533]]
        %s535 = sshra.s32 %s534, 3
        %s536 = sand.u32 %s534, 7
        %s537 = sshra.s32 %s534, 3
        %s538 = sand.u32 %s534, 7
        %s539 = smul.u32 %s535, 2
        %s540 = smul.u32 %s539, 8
        %s541 = sadd.s32 %s540, %s538
        %s542 = scalar_lea.vmem [#allocation4], %s541
        %v543 = vld [vmem:[%s542] ss:$8 sm:$0x3]
        %s544 = sadd.s32 %s116, 19
        %s545 = sld [smem:[#allocation3 + %s544]]
        %s546 = sshra.s32 %s545, 3
        %s547 = sand.u32 %s545, 7
        %s548 = sshra.s32 %s545, 3
        %s549 = sand.u32 %s545, 7
        %s550 = smul.u32 %s546, 2
        %s551 = smul.u32 %s550, 8
        %s552 = sadd.s32 %s551, %s549
        %s553 = scalar_lea.vmem [#allocation4], %s552
        %v554 = vld [vmem:[%s553] ss:$8 sm:$0x3]
        %s555 = sadd.s32 %s116, 20
        %s556 = sld [smem:[#allocation3 + %s555]]
        %s557 = sshra.s32 %s556, 3
        %s558 = sand.u32 %s556, 7
        %s559 = sshra.s32 %s556, 3
        %s560 = sand.u32 %s556, 7
        %s561 = smul.u32 %s557, 2
        %s562 = smul.u32 %s561, 8
        %s563 = sadd.s32 %s562, %s560
        %s564 = scalar_lea.vmem [#allocation4], %s563
        %v565 = vld [vmem:[%s564] ss:$8 sm:$0x3]
        %s566 = sadd.s32 %s116, 21
        %s567 = sld [smem:[#allocation3 + %s566]]
        %s568 = sshra.s32 %s567, 3
        %s569 = sand.u32 %s567, 7
        %s570 = sshra.s32 %s567, 3
        %s571 = sand.u32 %s567, 7
        %s572 = smul.u32 %s568, 2
        %s573 = smul.u32 %s572, 8
        %s574 = sadd.s32 %s573, %s571
        %s575 = scalar_lea.vmem [#allocation4], %s574
        %v576 = vld [vmem:[%s575] ss:$8 sm:$0x3]
        %s577 = sadd.s32 %s116, 22
        %s578 = sld [smem:[#allocation3 + %s577]]
        %s579 = sshra.s32 %s578, 3
        %s580 = sand.u32 %s578, 7
        %s581 = sshra.s32 %s578, 3
        %s582 = sand.u32 %s578, 7
        %s583 = smul.u32 %s579, 2
        %s584 = smul.u32 %s583, 8
        %s585 = sadd.s32 %s584, %s582
        %s586 = scalar_lea.vmem [#allocation4], %s585
        %v587 = vld [vmem:[%s586] ss:$8 sm:$0x3]
        %s588 = sadd.s32 %s116, 23
        %s589 = sld [smem:[#allocation3 + %s588]]
        %s590 = sshra.s32 %s589, 3
        %s591 = sand.u32 %s589, 7
        %s592 = sshra.s32 %s589, 3
        %s593 = sand.u32 %s589, 7
        %s594 = smul.u32 %s590, 2
        %s595 = smul.u32 %s594, 8
        %s596 = sadd.s32 %s595, %s593
        %s597 = scalar_lea.vmem [#allocation4], %s596
        %v598 = vld [vmem:[%s597] ss:$8 sm:$0x3]
        %v600 = vlaneseq
        %v601 = vshrl.u32 %v600, 7
        %v602 = vsub.s32 0, %v601
        %v603 = vrot.slane %v521, %v602
        %v604 = vlaneseq
        %v605 = vshrl.u32 %v604, 7
        %v606 = vsub.s32 1, %v605
        %v607 = vrot.slane %v521, %v606
        %v611 = vlaneseq
        %v612 = vshrl.u32 %v611, 7
        %v613 = vsub.s32 0, %v612
        %v614 = vrot.slane %v532, %v613
        %v615 = vlaneseq
        %v616 = vshrl.u32 %v615, 7
        %v617 = vsub.s32 1, %v616
        %v618 = vrot.slane %v532, %v617
        %v622 = vlaneseq
        %v623 = vshrl.u32 %v622, 7
        %v624 = vsub.s32 0, %v623
        %v625 = vrot.slane %v543, %v624
        %v626 = vlaneseq
        %v627 = vshrl.u32 %v626, 7
        %v628 = vsub.s32 1, %v627
        %v629 = vrot.slane %v543, %v628
        %v633 = vlaneseq
        %v634 = vshrl.u32 %v633, 7
        %v635 = vsub.s32 0, %v634
        %v636 = vrot.slane %v554, %v635
        %v637 = vlaneseq
        %v638 = vshrl.u32 %v637, 7
        %v639 = vsub.s32 1, %v638
        %v640 = vrot.slane %v554, %v639
        %v644 = vlaneseq
        %v645 = vshrl.u32 %v644, 7
        %v646 = vsub.s32 0, %v645
        %v647 = vrot.slane %v565, %v646
        %v648 = vlaneseq
        %v649 = vshrl.u32 %v648, 7
        %v650 = vsub.s32 1, %v649
        %v651 = vrot.slane %v565, %v650
        %v655 = vlaneseq
        %v656 = vshrl.u32 %v655, 7
        %v657 = vsub.s32 0, %v656
        %v658 = vrot.slane %v576, %v657
        %v659 = vlaneseq
        %v660 = vshrl.u32 %v659, 7
        %v661 = vsub.s32 1, %v660
        %v662 = vrot.slane %v576, %v661
        %v666 = vlaneseq
        %v667 = vshrl.u32 %v666, 7
        %v668 = vsub.s32 0, %v667
        %v669 = vrot.slane %v587, %v668
        %v670 = vlaneseq
        %v671 = vshrl.u32 %v670, 7
        %v672 = vsub.s32 1, %v671
        %v673 = vrot.slane %v587, %v672
        %v677 = vlaneseq
        %v678 = vshrl.u32 %v677, 7
        %v679 = vsub.s32 0, %v678
        %v680 = vrot.slane %v598, %v679
        %v681 = vlaneseq
        %v682 = vshrl.u32 %v681, 7
        %v683 = vsub.s32 1, %v682
        %v684 = vrot.slane %v598, %v683
        %v687 = vsel %vm292, %v603, %v614
        %v688 = vsel %vm292, %v607, %v618
        %v689 = vsel %vm295, %v687, %v625
        %v690 = vsel %vm295, %v688, %v629
        %v691 = vsel %vm298, %v689, %v636
        %v692 = vsel %vm298, %v690, %v640
        %v693 = vsel %vm301, %v691, %v647
        %v694 = vsel %vm301, %v692, %v651
        %v695 = vsel %vm304, %v693, %v658
        %v696 = vsel %vm304, %v694, %v662
        %v697 = vsel %vm307, %v695, %v669
        %v698 = vsel %vm307, %v696, %v673
        %v699 = vsel %vm310, %v697, %v680
        %v700 = vsel %vm310, %v698, %v684
        %v701 = vmul.f32 %v699, 16.0
        %v702 = vmul.f32 %v700, 16.0
        %703 = vst [vmem:[%s114 + $0x20] sm:$0xff] %v701
        %704 = vst [vmem:[%s114 + $0x28] sm:$0xff] %v702
        %s705 = sadd.s32 %s116, 24
        %s706 = sld [smem:[#allocation3 + %s705]]
        %s707 = sshra.s32 %s706, 3
        %s708 = sand.u32 %s706, 7
        %s709 = sshra.s32 %s706, 3
        %s710 = sand.u32 %s706, 7
        %s711 = smul.u32 %s707, 2
        %s712 = smul.u32 %s711, 8
        %s713 = sadd.s32 %s712, %s710
        %s714 = scalar_lea.vmem [#allocation4], %s713
        %v715 = vld [vmem:[%s714] ss:$8 sm:$0x3]
        %s716 = sadd.s32 %s116, 25
        %s717 = sld [smem:[#allocation3 + %s716]]
        %s718 = sshra.s32 %s717, 3
        %s719 = sand.u32 %s717, 7
        %s720 = sshra.s32 %s717, 3
        %s721 = sand.u32 %s717, 7
        %s722 = smul.u32 %s718, 2
        %s723 = smul.u32 %s722, 8
        %s724 = sadd.s32 %s723, %s721
        %s725 = scalar_lea.vmem [#allocation4], %s724
        %v726 = vld [vmem:[%s725] ss:$8 sm:$0x3]
        %s727 = sadd.s32 %s116, 26
        %s728 = sld [smem:[#allocation3 + %s727]]
        %s729 = sshra.s32 %s728, 3
        %s730 = sand.u32 %s728, 7
        %s731 = sshra.s32 %s728, 3
        %s732 = sand.u32 %s728, 7
        %s733 = smul.u32 %s729, 2
        %s734 = smul.u32 %s733, 8
        %s735 = sadd.s32 %s734, %s732
        %s736 = scalar_lea.vmem [#allocation4], %s735
        %v737 = vld [vmem:[%s736] ss:$8 sm:$0x3]
        %s738 = sadd.s32 %s116, 27
        %s739 = sld [smem:[#allocation3 + %s738]]
        %s740 = sshra.s32 %s739, 3
        %s741 = sand.u32 %s739, 7
        %s742 = sshra.s32 %s739, 3
        %s743 = sand.u32 %s739, 7
        %s744 = smul.u32 %s740, 2
        %s745 = smul.u32 %s744, 8
        %s746 = sadd.s32 %s745, %s743
        %s747 = scalar_lea.vmem [#allocation4], %s746
        %v748 = vld [vmem:[%s747] ss:$8 sm:$0x3]
        %s749 = sadd.s32 %s116, 28
        %s750 = sld [smem:[#allocation3 + %s749]]
        %s751 = sshra.s32 %s750, 3
        %s752 = sand.u32 %s750, 7
        %s753 = sshra.s32 %s750, 3
        %s754 = sand.u32 %s750, 7
        %s755 = smul.u32 %s751, 2
        %s756 = smul.u32 %s755, 8
        %s757 = sadd.s32 %s756, %s754
        %s758 = scalar_lea.vmem [#allocation4], %s757
        %v759 = vld [vmem:[%s758] ss:$8 sm:$0x3]
        %s760 = sadd.s32 %s116, 29
        %s761 = sld [smem:[#allocation3 + %s760]]
        %s762 = sshra.s32 %s761, 3
        %s763 = sand.u32 %s761, 7
        %s764 = sshra.s32 %s761, 3
        %s765 = sand.u32 %s761, 7
        %s766 = smul.u32 %s762, 2
        %s767 = smul.u32 %s766, 8
        %s768 = sadd.s32 %s767, %s765
        %s769 = scalar_lea.vmem [#allocation4], %s768
        %v770 = vld [vmem:[%s769] ss:$8 sm:$0x3]
        %s771 = sadd.s32 %s116, 30
        %s772 = sld [smem:[#allocation3 + %s771]]
        %s773 = sshra.s32 %s772, 3
        %s774 = sand.u32 %s772, 7
        %s775 = sshra.s32 %s772, 3
        %s776 = sand.u32 %s772, 7
        %s777 = smul.u32 %s773, 2
        %s778 = smul.u32 %s777, 8
        %s779 = sadd.s32 %s778, %s776
        %s780 = scalar_lea.vmem [#allocation4], %s779
        %v781 = vld [vmem:[%s780] ss:$8 sm:$0x3]
        %s782 = sadd.s32 %s116, 31
        %s783 = sld [smem:[#allocation3 + %s782]]
        %s784 = sshra.s32 %s783, 3
        %s785 = sand.u32 %s783, 7
        %s786 = sshra.s32 %s783, 3
        %s787 = sand.u32 %s783, 7
        %s788 = smul.u32 %s784, 2
        %s789 = smul.u32 %s788, 8
        %s790 = sadd.s32 %s789, %s787
        %s791 = scalar_lea.vmem [#allocation4], %s790
        %v792 = vld [vmem:[%s791] ss:$8 sm:$0x3]
        %v794 = vlaneseq
        %v795 = vshrl.u32 %v794, 7
        %v796 = vsub.s32 0, %v795
        %v797 = vrot.slane %v715, %v796
        %v798 = vlaneseq
        %v799 = vshrl.u32 %v798, 7
        %v800 = vsub.s32 1, %v799
        %v801 = vrot.slane %v715, %v800
        %v805 = vlaneseq
        %v806 = vshrl.u32 %v805, 7
        %v807 = vsub.s32 0, %v806
        %v808 = vrot.slane %v726, %v807
        %v809 = vlaneseq
        %v810 = vshrl.u32 %v809, 7
        %v811 = vsub.s32 1, %v810
        %v812 = vrot.slane %v726, %v811
        %v816 = vlaneseq
        %v817 = vshrl.u32 %v816, 7
        %v818 = vsub.s32 0, %v817
        %v819 = vrot.slane %v737, %v818
        %v820 = vlaneseq
        %v821 = vshrl.u32 %v820, 7
        %v822 = vsub.s32 1, %v821
        %v823 = vrot.slane %v737, %v822
        %v827 = vlaneseq
        %v828 = vshrl.u32 %v827, 7
        %v829 = vsub.s32 0, %v828
        %v830 = vrot.slane %v748, %v829
        %v831 = vlaneseq
        %v832 = vshrl.u32 %v831, 7
        %v833 = vsub.s32 1, %v832
        %v834 = vrot.slane %v748, %v833
        %v838 = vlaneseq
        %v839 = vshrl.u32 %v838, 7
        %v840 = vsub.s32 0, %v839
        %v841 = vrot.slane %v759, %v840
        %v842 = vlaneseq
        %v843 = vshrl.u32 %v842, 7
        %v844 = vsub.s32 1, %v843
        %v845 = vrot.slane %v759, %v844
        %v849 = vlaneseq
        %v850 = vshrl.u32 %v849, 7
        %v851 = vsub.s32 0, %v850
        %v852 = vrot.slane %v770, %v851
        %v853 = vlaneseq
        %v854 = vshrl.u32 %v853, 7
        %v855 = vsub.s32 1, %v854
        %v856 = vrot.slane %v770, %v855
        %v860 = vlaneseq
        %v861 = vshrl.u32 %v860, 7
        %v862 = vsub.s32 0, %v861
        %v863 = vrot.slane %v781, %v862
        %v864 = vlaneseq
        %v865 = vshrl.u32 %v864, 7
        %v866 = vsub.s32 1, %v865
        %v867 = vrot.slane %v781, %v866
        %v871 = vlaneseq
        %v872 = vshrl.u32 %v871, 7
        %v873 = vsub.s32 0, %v872
        %v874 = vrot.slane %v792, %v873
        %v875 = vlaneseq
        %v876 = vshrl.u32 %v875, 7
        %v877 = vsub.s32 1, %v876
        %v878 = vrot.slane %v792, %v877
        %v881 = vsel %vm292, %v797, %v808
        %v882 = vsel %vm292, %v801, %v812
        %v883 = vsel %vm295, %v881, %v819
        %v884 = vsel %vm295, %v882, %v823
        %v885 = vsel %vm298, %v883, %v830
        %v886 = vsel %vm298, %v884, %v834
        %v887 = vsel %vm301, %v885, %v841
        %v888 = vsel %vm301, %v886, %v845
        %v889 = vsel %vm304, %v887, %v852
        %v890 = vsel %vm304, %v888, %v856
        %v891 = vsel %vm307, %v889, %v863
        %v892 = vsel %vm307, %v890, %v867
        %v893 = vsel %vm310, %v891, %v874
        %v894 = vsel %vm310, %v892, %v878
        %v895 = vmul.f32 %v893, 16.0
        %v896 = vmul.f32 %v894, 16.0
        %897 = vst [vmem:[%s114 + $0x30] sm:$0xff] %v895
        %898 = vst [vmem:[%s114 + $0x38] sm:$0xff] %v896
        %s899 = sadd.s32 %s116, 32
        %s900 = sld [smem:[#allocation3 + %s899]]
        %s901 = sshra.s32 %s900, 3
        %s902 = sand.u32 %s900, 7
        %s903 = sshra.s32 %s900, 3
        %s904 = sand.u32 %s900, 7
        %s905 = smul.u32 %s901, 2
        %s906 = smul.u32 %s905, 8
        %s907 = sadd.s32 %s906, %s904
        %s908 = scalar_lea.vmem [#allocation4], %s907
        %v909 = vld [vmem:[%s908] ss:$8 sm:$0x3]
        %s910 = sadd.s32 %s116, 33
        %s911 = sld [smem:[#allocation3 + %s910]]
        %s912 = sshra.s32 %s911, 3
        %s913 = sand.u32 %s911, 7
        %s914 = sshra.s32 %s911, 3
        %s915 = sand.u32 %s911, 7
        %s916 = smul.u32 %s912, 2
        %s917 = smul.u32 %s916, 8
        %s918 = sadd.s32 %s917, %s915
        %s919 = scalar_lea.vmem [#allocation4], %s918
        %v920 = vld [vmem:[%s919] ss:$8 sm:$0x3]
        %s921 = sadd.s32 %s116, 34
        %s922 = sld [smem:[#allocation3 + %s921]]
        %s923 = sshra.s32 %s922, 3
        %s924 = sand.u32 %s922, 7
        %s925 = sshra.s32 %s922, 3
        %s926 = sand.u32 %s922, 7
        %s927 = smul.u32 %s923, 2
        %s928 = smul.u32 %s927, 8
        %s929 = sadd.s32 %s928, %s926
        %s930 = scalar_lea.vmem [#allocation4], %s929
        %v931 = vld [vmem:[%s930] ss:$8 sm:$0x3]
        %s932 = sadd.s32 %s116, 35
        %s933 = sld [smem:[#allocation3 + %s932]]
        %s934 = sshra.s32 %s933, 3
        %s935 = sand.u32 %s933, 7
        %s936 = sshra.s32 %s933, 3
        %s937 = sand.u32 %s933, 7
        %s938 = smul.u32 %s934, 2
        %s939 = smul.u32 %s938, 8
        %s940 = sadd.s32 %s939, %s937
        %s941 = scalar_lea.vmem [#allocation4], %s940
        %v942 = vld [vmem:[%s941] ss:$8 sm:$0x3]
        %s943 = sadd.s32 %s116, 36
        %s944 = sld [smem:[#allocation3 + %s943]]
        %s945 = sshra.s32 %s944, 3
        %s946 = sand.u32 %s944, 7
        %s947 = sshra.s32 %s944, 3
        %s948 = sand.u32 %s944, 7
        %s949 = smul.u32 %s945, 2
        %s950 = smul.u32 %s949, 8
        %s951 = sadd.s32 %s950, %s948
        %s952 = scalar_lea.vmem [#allocation4], %s951
        %v953 = vld [vmem:[%s952] ss:$8 sm:$0x3]
        %s954 = sadd.s32 %s116, 37
        %s955 = sld [smem:[#allocation3 + %s954]]
        %s956 = sshra.s32 %s955, 3
        %s957 = sand.u32 %s955, 7
        %s958 = sshra.s32 %s955, 3
        %s959 = sand.u32 %s955, 7
        %s960 = smul.u32 %s956, 2
        %s961 = smul.u32 %s960, 8
        %s962 = sadd.s32 %s961, %s959
        %s963 = scalar_lea.vmem [#allocation4], %s962
        %v964 = vld [vmem:[%s963] ss:$8 sm:$0x3]
        %s965 = sadd.s32 %s116, 38
        %s966 = sld [smem:[#allocation3 + %s965]]
        %s967 = sshra.s32 %s966, 3
        %s968 = sand.u32 %s966, 7
        %s969 = sshra.s32 %s966, 3
        %s970 = sand.u32 %s966, 7
        %s971 = smul.u32 %s967, 2
        %s972 = smul.u32 %s971, 8
        %s973 = sadd.s32 %s972, %s970
        %s974 = scalar_lea.vmem [#allocation4], %s973
        %v975 = vld [vmem:[%s974] ss:$8 sm:$0x3]
        %s976 = sadd.s32 %s116, 39
        %s977 = sld [smem:[#allocation3 + %s976]]
        %s978 = sshra.s32 %s977, 3
        %s979 = sand.u32 %s977, 7
        %s980 = sshra.s32 %s977, 3
        %s981 = sand.u32 %s977, 7
        %s982 = smul.u32 %s978, 2
        %s983 = smul.u32 %s982, 8
        %s984 = sadd.s32 %s983, %s981
        %s985 = scalar_lea.vmem [#allocation4], %s984
        %v986 = vld [vmem:[%s985] ss:$8 sm:$0x3]
        %v988 = vlaneseq
        %v989 = vshrl.u32 %v988, 7
        %v990 = vsub.s32 0, %v989
        %v991 = vrot.slane %v909, %v990
        %v992 = vlaneseq
        %v993 = vshrl.u32 %v992, 7
        %v994 = vsub.s32 1, %v993
        %v995 = vrot.slane %v909, %v994
        %v999 = vlaneseq
        %v1000 = vshrl.u32 %v999, 7
        %v1001 = vsub.s32 0, %v1000
        %v1002 = vrot.slane %v920, %v1001
        %v1003 = vlaneseq
        %v1004 = vshrl.u32 %v1003, 7
        %v1005 = vsub.s32 1, %v1004
        %v1006 = vrot.slane %v920, %v1005
        %v1010 = vlaneseq
        %v1011 = vshrl.u32 %v1010, 7
        %v1012 = vsub.s32 0, %v1011
        %v1013 = vrot.slane %v931, %v1012
        %v1014 = vlaneseq
        %v1015 = vshrl.u32 %v1014, 7
        %v1016 = vsub.s32 1, %v1015
        %v1017 = vrot.slane %v931, %v1016
        %v1021 = vlaneseq
        %v1022 = vshrl.u32 %v1021, 7
        %v1023 = vsub.s32 0, %v1022
        %v1024 = vrot.slane %v942, %v1023
        %v1025 = vlaneseq
        %v1026 = vshrl.u32 %v1025, 7
        %v1027 = vsub.s32 1, %v1026
        %v1028 = vrot.slane %v942, %v1027
        %v1032 = vlaneseq
        %v1033 = vshrl.u32 %v1032, 7
        %v1034 = vsub.s32 0, %v1033
        %v1035 = vrot.slane %v953, %v1034
        %v1036 = vlaneseq
        %v1037 = vshrl.u32 %v1036, 7
        %v1038 = vsub.s32 1, %v1037
        %v1039 = vrot.slane %v953, %v1038
        %v1043 = vlaneseq
        %v1044 = vshrl.u32 %v1043, 7
        %v1045 = vsub.s32 0, %v1044
        %v1046 = vrot.slane %v964, %v1045
        %v1047 = vlaneseq
        %v1048 = vshrl.u32 %v1047, 7
        %v1049 = vsub.s32 1, %v1048
        %v1050 = vrot.slane %v964, %v1049
        %v1054 = vlaneseq
        %v1055 = vshrl.u32 %v1054, 7
        %v1056 = vsub.s32 0, %v1055
        %v1057 = vrot.slane %v975, %v1056
        %v1058 = vlaneseq
        %v1059 = vshrl.u32 %v1058, 7
        %v1060 = vsub.s32 1, %v1059
        %v1061 = vrot.slane %v975, %v1060
        %v1065 = vlaneseq
        %v1066 = vshrl.u32 %v1065, 7
        %v1067 = vsub.s32 0, %v1066
        %v1068 = vrot.slane %v986, %v1067
        %v1069 = vlaneseq
        %v1070 = vshrl.u32 %v1069, 7
        %v1071 = vsub.s32 1, %v1070
        %v1072 = vrot.slane %v986, %v1071
        %v1075 = vsel %vm292, %v991, %v1002
        %v1076 = vsel %vm292, %v995, %v1006
        %v1077 = vsel %vm295, %v1075, %v1013
        %v1078 = vsel %vm295, %v1076, %v1017
        %v1079 = vsel %vm298, %v1077, %v1024
        %v1080 = vsel %vm298, %v1078, %v1028
        %v1081 = vsel %vm301, %v1079, %v1035
        %v1082 = vsel %vm301, %v1080, %v1039
        %v1083 = vsel %vm304, %v1081, %v1046
        %v1084 = vsel %vm304, %v1082, %v1050
        %v1085 = vsel %vm307, %v1083, %v1057
        %v1086 = vsel %vm307, %v1084, %v1061
        %v1087 = vsel %vm310, %v1085, %v1068
        %v1088 = vsel %vm310, %v1086, %v1072
        %v1089 = vmul.f32 %v1087, 16.0
        %v1090 = vmul.f32 %v1088, 16.0
        %1091 = vst [vmem:[%s114 + $0x40] sm:$0xff] %v1089
        %1092 = vst [vmem:[%s114 + $0x48] sm:$0xff] %v1090
        %s1093 = sadd.s32 %s116, 40
        %s1094 = sld [smem:[#allocation3 + %s1093]]
        %s1095 = sshra.s32 %s1094, 3
        %s1096 = sand.u32 %s1094, 7
        %s1097 = sshra.s32 %s1094, 3
        %s1098 = sand.u32 %s1094, 7
        %s1099 = smul.u32 %s1095, 2
        %s1100 = smul.u32 %s1099, 8
        %s1101 = sadd.s32 %s1100, %s1098
        %s1102 = scalar_lea.vmem [#allocation4], %s1101
        %v1103 = vld [vmem:[%s1102] ss:$8 sm:$0x3]
        %s1104 = sadd.s32 %s116, 41
        %s1105 = sld [smem:[#allocation3 + %s1104]]
        %s1106 = sshra.s32 %s1105, 3
        %s1107 = sand.u32 %s1105, 7
        %s1108 = sshra.s32 %s1105, 3
        %s1109 = sand.u32 %s1105, 7
        %s1110 = smul.u32 %s1106, 2
        %s1111 = smul.u32 %s1110, 8
        %s1112 = sadd.s32 %s1111, %s1109
        %s1113 = scalar_lea.vmem [#allocation4], %s1112
        %v1114 = vld [vmem:[%s1113] ss:$8 sm:$0x3]
        %s1115 = sadd.s32 %s116, 42
        %s1116 = sld [smem:[#allocation3 + %s1115]]
        %s1117 = sshra.s32 %s1116, 3
        %s1118 = sand.u32 %s1116, 7
        %s1119 = sshra.s32 %s1116, 3
        %s1120 = sand.u32 %s1116, 7
        %s1121 = smul.u32 %s1117, 2
        %s1122 = smul.u32 %s1121, 8
        %s1123 = sadd.s32 %s1122, %s1120
        %s1124 = scalar_lea.vmem [#allocation4], %s1123
        %v1125 = vld [vmem:[%s1124] ss:$8 sm:$0x3]
        %s1126 = sadd.s32 %s116, 43
        %s1127 = sld [smem:[#allocation3 + %s1126]]
        %s1128 = sshra.s32 %s1127, 3
        %s1129 = sand.u32 %s1127, 7
        %s1130 = sshra.s32 %s1127, 3
        %s1131 = sand.u32 %s1127, 7
        %s1132 = smul.u32 %s1128, 2
        %s1133 = smul.u32 %s1132, 8
        %s1134 = sadd.s32 %s1133, %s1131
        %s1135 = scalar_lea.vmem [#allocation4], %s1134
        %v1136 = vld [vmem:[%s1135] ss:$8 sm:$0x3]
        %s1137 = sadd.s32 %s116, 44
        %s1138 = sld [smem:[#allocation3 + %s1137]]
        %s1139 = sshra.s32 %s1138, 3
        %s1140 = sand.u32 %s1138, 7
        %s1141 = sshra.s32 %s1138, 3
        %s1142 = sand.u32 %s1138, 7
        %s1143 = smul.u32 %s1139, 2
        %s1144 = smul.u32 %s1143, 8
        %s1145 = sadd.s32 %s1144, %s1142
        %s1146 = scalar_lea.vmem [#allocation4], %s1145
        %v1147 = vld [vmem:[%s1146] ss:$8 sm:$0x3]
        %s1148 = sadd.s32 %s116, 45
        %s1149 = sld [smem:[#allocation3 + %s1148]]
        %s1150 = sshra.s32 %s1149, 3
        %s1151 = sand.u32 %s1149, 7
        %s1152 = sshra.s32 %s1149, 3
        %s1153 = sand.u32 %s1149, 7
        %s1154 = smul.u32 %s1150, 2
        %s1155 = smul.u32 %s1154, 8
        %s1156 = sadd.s32 %s1155, %s1153
        %s1157 = scalar_lea.vmem [#allocation4], %s1156
        %v1158 = vld [vmem:[%s1157] ss:$8 sm:$0x3]
        %s1159 = sadd.s32 %s116, 46
        %s1160 = sld [smem:[#allocation3 + %s1159]]
        %s1161 = sshra.s32 %s1160, 3
        %s1162 = sand.u32 %s1160, 7
        %s1163 = sshra.s32 %s1160, 3
        %s1164 = sand.u32 %s1160, 7
        %s1165 = smul.u32 %s1161, 2
        %s1166 = smul.u32 %s1165, 8
        %s1167 = sadd.s32 %s1166, %s1164
        %s1168 = scalar_lea.vmem [#allocation4], %s1167
        %v1169 = vld [vmem:[%s1168] ss:$8 sm:$0x3]
        %s1170 = sadd.s32 %s116, 47
        %s1171 = sld [smem:[#allocation3 + %s1170]]
        %s1172 = sshra.s32 %s1171, 3
        %s1173 = sand.u32 %s1171, 7
        %s1174 = sshra.s32 %s1171, 3
        %s1175 = sand.u32 %s1171, 7
        %s1176 = smul.u32 %s1172, 2
        %s1177 = smul.u32 %s1176, 8
        %s1178 = sadd.s32 %s1177, %s1175
        %s1179 = scalar_lea.vmem [#allocation4], %s1178
        %v1180 = vld [vmem:[%s1179] ss:$8 sm:$0x3]
        %v1182 = vlaneseq
        %v1183 = vshrl.u32 %v1182, 7
        %v1184 = vsub.s32 0, %v1183
        %v1185 = vrot.slane %v1103, %v1184
        %v1186 = vlaneseq
        %v1187 = vshrl.u32 %v1186, 7
        %v1188 = vsub.s32 1, %v1187
        %v1189 = vrot.slane %v1103, %v1188
        %v1193 = vlaneseq
        %v1194 = vshrl.u32 %v1193, 7
        %v1195 = vsub.s32 0, %v1194
        %v1196 = vrot.slane %v1114, %v1195
        %v1197 = vlaneseq
        %v1198 = vshrl.u32 %v1197, 7
        %v1199 = vsub.s32 1, %v1198
        %v1200 = vrot.slane %v1114, %v1199
        %v1204 = vlaneseq
        %v1205 = vshrl.u32 %v1204, 7
        %v1206 = vsub.s32 0, %v1205
        %v1207 = vrot.slane %v1125, %v1206
        %v1208 = vlaneseq
        %v1209 = vshrl.u32 %v1208, 7
        %v1210 = vsub.s32 1, %v1209
        %v1211 = vrot.slane %v1125, %v1210
        %v1215 = vlaneseq
        %v1216 = vshrl.u32 %v1215, 7
        %v1217 = vsub.s32 0, %v1216
        %v1218 = vrot.slane %v1136, %v1217
        %v1219 = vlaneseq
        %v1220 = vshrl.u32 %v1219, 7
        %v1221 = vsub.s32 1, %v1220
        %v1222 = vrot.slane %v1136, %v1221
        %v1226 = vlaneseq
        %v1227 = vshrl.u32 %v1226, 7
        %v1228 = vsub.s32 0, %v1227
        %v1229 = vrot.slane %v1147, %v1228
        %v1230 = vlaneseq
        %v1231 = vshrl.u32 %v1230, 7
        %v1232 = vsub.s32 1, %v1231
        %v1233 = vrot.slane %v1147, %v1232
        %v1237 = vlaneseq
        %v1238 = vshrl.u32 %v1237, 7
        %v1239 = vsub.s32 0, %v1238
        %v1240 = vrot.slane %v1158, %v1239
        %v1241 = vlaneseq
        %v1242 = vshrl.u32 %v1241, 7
        %v1243 = vsub.s32 1, %v1242
        %v1244 = vrot.slane %v1158, %v1243
        %v1248 = vlaneseq
        %v1249 = vshrl.u32 %v1248, 7
        %v1250 = vsub.s32 0, %v1249
        %v1251 = vrot.slane %v1169, %v1250
        %v1252 = vlaneseq
        %v1253 = vshrl.u32 %v1252, 7
        %v1254 = vsub.s32 1, %v1253
        %v1255 = vrot.slane %v1169, %v1254
        %v1259 = vlaneseq
        %v1260 = vshrl.u32 %v1259, 7
        %v1261 = vsub.s32 0, %v1260
        %v1262 = vrot.slane %v1180, %v1261
        %v1263 = vlaneseq
        %v1264 = vshrl.u32 %v1263, 7
        %v1265 = vsub.s32 1, %v1264
        %v1266 = vrot.slane %v1180, %v1265
        %v1269 = vsel %vm292, %v1185, %v1196
        %v1270 = vsel %vm292, %v1189, %v1200
        %v1271 = vsel %vm295, %v1269, %v1207
        %v1272 = vsel %vm295, %v1270, %v1211
        %v1273 = vsel %vm298, %v1271, %v1218
        %v1274 = vsel %vm298, %v1272, %v1222
        %v1275 = vsel %vm301, %v1273, %v1229
        %v1276 = vsel %vm301, %v1274, %v1233
        %v1277 = vsel %vm304, %v1275, %v1240
        %v1278 = vsel %vm304, %v1276, %v1244
        %v1279 = vsel %vm307, %v1277, %v1251
        %v1280 = vsel %vm307, %v1278, %v1255
        %v1281 = vsel %vm310, %v1279, %v1262
        %v1282 = vsel %vm310, %v1280, %v1266
        %v1283 = vmul.f32 %v1281, 16.0
        %v1284 = vmul.f32 %v1282, 16.0
        %1285 = vst [vmem:[%s114 + $0x50] sm:$0xff] %v1283
        %1286 = vst [vmem:[%s114 + $0x58] sm:$0xff] %v1284
        %s1287 = sadd.s32 %s116, 48
        %s1288 = sld [smem:[#allocation3 + %s1287]]
        %s1289 = sshra.s32 %s1288, 3
        %s1290 = sand.u32 %s1288, 7
        %s1291 = sshra.s32 %s1288, 3
        %s1292 = sand.u32 %s1288, 7
        %s1293 = smul.u32 %s1289, 2
        %s1294 = smul.u32 %s1293, 8
        %s1295 = sadd.s32 %s1294, %s1292
        %s1296 = scalar_lea.vmem [#allocation4], %s1295
        %v1297 = vld [vmem:[%s1296] ss:$8 sm:$0x3]
        %s1298 = sadd.s32 %s116, 49
        %s1299 = sld [smem:[#allocation3 + %s1298]]
        %s1300 = sshra.s32 %s1299, 3
        %s1301 = sand.u32 %s1299, 7
        %s1302 = sshra.s32 %s1299, 3
        %s1303 = sand.u32 %s1299, 7
        %s1304 = smul.u32 %s1300, 2
        %s1305 = smul.u32 %s1304, 8
        %s1306 = sadd.s32 %s1305, %s1303
        %s1307 = scalar_lea.vmem [#allocation4], %s1306
        %v1308 = vld [vmem:[%s1307] ss:$8 sm:$0x3]
        %s1309 = sadd.s32 %s116, 50
        %s1310 = sld [smem:[#allocation3 + %s1309]]
        %s1311 = sshra.s32 %s1310, 3
        %s1312 = sand.u32 %s1310, 7
        %s1313 = sshra.s32 %s1310, 3
        %s1314 = sand.u32 %s1310, 7
        %s1315 = smul.u32 %s1311, 2
        %s1316 = smul.u32 %s1315, 8
        %s1317 = sadd.s32 %s1316, %s1314
        %s1318 = scalar_lea.vmem [#allocation4], %s1317
        %v1319 = vld [vmem:[%s1318] ss:$8 sm:$0x3]
        %s1320 = sadd.s32 %s116, 51
        %s1321 = sld [smem:[#allocation3 + %s1320]]
        %s1322 = sshra.s32 %s1321, 3
        %s1323 = sand.u32 %s1321, 7
        %s1324 = sshra.s32 %s1321, 3
        %s1325 = sand.u32 %s1321, 7
        %s1326 = smul.u32 %s1322, 2
        %s1327 = smul.u32 %s1326, 8
        %s1328 = sadd.s32 %s1327, %s1325
        %s1329 = scalar_lea.vmem [#allocation4], %s1328
        %v1330 = vld [vmem:[%s1329] ss:$8 sm:$0x3]
        %s1331 = sadd.s32 %s116, 52
        %s1332 = sld [smem:[#allocation3 + %s1331]]
        %s1333 = sshra.s32 %s1332, 3
        %s1334 = sand.u32 %s1332, 7
        %s1335 = sshra.s32 %s1332, 3
        %s1336 = sand.u32 %s1332, 7
        %s1337 = smul.u32 %s1333, 2
        %s1338 = smul.u32 %s1337, 8
        %s1339 = sadd.s32 %s1338, %s1336
        %s1340 = scalar_lea.vmem [#allocation4], %s1339
        %v1341 = vld [vmem:[%s1340] ss:$8 sm:$0x3]
        %s1342 = sadd.s32 %s116, 53
        %s1343 = sld [smem:[#allocation3 + %s1342]]
        %s1344 = sshra.s32 %s1343, 3
        %s1345 = sand.u32 %s1343, 7
        %s1346 = sshra.s32 %s1343, 3
        %s1347 = sand.u32 %s1343, 7
        %s1348 = smul.u32 %s1344, 2
        %s1349 = smul.u32 %s1348, 8
        %s1350 = sadd.s32 %s1349, %s1347
        %s1351 = scalar_lea.vmem [#allocation4], %s1350
        %v1352 = vld [vmem:[%s1351] ss:$8 sm:$0x3]
        %s1353 = sadd.s32 %s116, 54
        %s1354 = sld [smem:[#allocation3 + %s1353]]
        %s1355 = sshra.s32 %s1354, 3
        %s1356 = sand.u32 %s1354, 7
        %s1357 = sshra.s32 %s1354, 3
        %s1358 = sand.u32 %s1354, 7
        %s1359 = smul.u32 %s1355, 2
        %s1360 = smul.u32 %s1359, 8
        %s1361 = sadd.s32 %s1360, %s1358
        %s1362 = scalar_lea.vmem [#allocation4], %s1361
        %v1363 = vld [vmem:[%s1362] ss:$8 sm:$0x3]
        %s1364 = sadd.s32 %s116, 55
        %s1365 = sld [smem:[#allocation3 + %s1364]]
        %s1366 = sshra.s32 %s1365, 3
        %s1367 = sand.u32 %s1365, 7
        %s1368 = sshra.s32 %s1365, 3
        %s1369 = sand.u32 %s1365, 7
        %s1370 = smul.u32 %s1366, 2
        %s1371 = smul.u32 %s1370, 8
        %s1372 = sadd.s32 %s1371, %s1369
        %s1373 = scalar_lea.vmem [#allocation4], %s1372
        %v1374 = vld [vmem:[%s1373] ss:$8 sm:$0x3]
        %v1376 = vlaneseq
        %v1377 = vshrl.u32 %v1376, 7
        %v1378 = vsub.s32 0, %v1377
        %v1379 = vrot.slane %v1297, %v1378
        %v1380 = vlaneseq
        %v1381 = vshrl.u32 %v1380, 7
        %v1382 = vsub.s32 1, %v1381
        %v1383 = vrot.slane %v1297, %v1382
        %v1387 = vlaneseq
        %v1388 = vshrl.u32 %v1387, 7
        %v1389 = vsub.s32 0, %v1388
        %v1390 = vrot.slane %v1308, %v1389
        %v1391 = vlaneseq
        %v1392 = vshrl.u32 %v1391, 7
        %v1393 = vsub.s32 1, %v1392
        %v1394 = vrot.slane %v1308, %v1393
        %v1398 = vlaneseq
        %v1399 = vshrl.u32 %v1398, 7
        %v1400 = vsub.s32 0, %v1399
        %v1401 = vrot.slane %v1319, %v1400
        %v1402 = vlaneseq
        %v1403 = vshrl.u32 %v1402, 7
        %v1404 = vsub.s32 1, %v1403
        %v1405 = vrot.slane %v1319, %v1404
        %v1409 = vlaneseq
        %v1410 = vshrl.u32 %v1409, 7
        %v1411 = vsub.s32 0, %v1410
        %v1412 = vrot.slane %v1330, %v1411
        %v1413 = vlaneseq
        %v1414 = vshrl.u32 %v1413, 7
        %v1415 = vsub.s32 1, %v1414
        %v1416 = vrot.slane %v1330, %v1415
        %v1420 = vlaneseq
        %v1421 = vshrl.u32 %v1420, 7
        %v1422 = vsub.s32 0, %v1421
        %v1423 = vrot.slane %v1341, %v1422
        %v1424 = vlaneseq
        %v1425 = vshrl.u32 %v1424, 7
        %v1426 = vsub.s32 1, %v1425
        %v1427 = vrot.slane %v1341, %v1426
        %v1431 = vlaneseq
        %v1432 = vshrl.u32 %v1431, 7
        %v1433 = vsub.s32 0, %v1432
        %v1434 = vrot.slane %v1352, %v1433
        %v1435 = vlaneseq
        %v1436 = vshrl.u32 %v1435, 7
        %v1437 = vsub.s32 1, %v1436
        %v1438 = vrot.slane %v1352, %v1437
        %v1442 = vlaneseq
        %v1443 = vshrl.u32 %v1442, 7
        %v1444 = vsub.s32 0, %v1443
        %v1445 = vrot.slane %v1363, %v1444
        %v1446 = vlaneseq
        %v1447 = vshrl.u32 %v1446, 7
        %v1448 = vsub.s32 1, %v1447
        %v1449 = vrot.slane %v1363, %v1448
        %v1453 = vlaneseq
        %v1454 = vshrl.u32 %v1453, 7
        %v1455 = vsub.s32 0, %v1454
        %v1456 = vrot.slane %v1374, %v1455
        %v1457 = vlaneseq
        %v1458 = vshrl.u32 %v1457, 7
        %v1459 = vsub.s32 1, %v1458
        %v1460 = vrot.slane %v1374, %v1459
        %v1463 = vsel %vm292, %v1379, %v1390
        %v1464 = vsel %vm292, %v1383, %v1394
        %v1465 = vsel %vm295, %v1463, %v1401
        %v1466 = vsel %vm295, %v1464, %v1405
        %v1467 = vsel %vm298, %v1465, %v1412
        %v1468 = vsel %vm298, %v1466, %v1416
        %v1469 = vsel %vm301, %v1467, %v1423
        %v1470 = vsel %vm301, %v1468, %v1427
        %v1471 = vsel %vm304, %v1469, %v1434
        %v1472 = vsel %vm304, %v1470, %v1438
        %v1473 = vsel %vm307, %v1471, %v1445
        %v1474 = vsel %vm307, %v1472, %v1449
        %v1475 = vsel %vm310, %v1473, %v1456
        %v1476 = vsel %vm310, %v1474, %v1460
        %v1477 = vmul.f32 %v1475, 16.0
        %v1478 = vmul.f32 %v1476, 16.0
        %1479 = vst [vmem:[%s114 + $0x60] sm:$0xff] %v1477
        %1480 = vst [vmem:[%s114 + $0x68] sm:$0xff] %v1478
        %s1481 = sadd.s32 %s116, 56
        %s1482 = sld [smem:[#allocation3 + %s1481]]
        %s1483 = sshra.s32 %s1482, 3
        %s1484 = sand.u32 %s1482, 7
        %s1485 = sshra.s32 %s1482, 3
        %s1486 = sand.u32 %s1482, 7
        %s1487 = smul.u32 %s1483, 2
        %s1488 = smul.u32 %s1487, 8
        %s1489 = sadd.s32 %s1488, %s1486
        %s1490 = scalar_lea.vmem [#allocation4], %s1489
        %v1491 = vld [vmem:[%s1490] ss:$8 sm:$0x3]
        %s1492 = sadd.s32 %s116, 57
        %s1493 = sld [smem:[#allocation3 + %s1492]]
        %s1494 = sshra.s32 %s1493, 3
        %s1495 = sand.u32 %s1493, 7
        %s1496 = sshra.s32 %s1493, 3
        %s1497 = sand.u32 %s1493, 7
        %s1498 = smul.u32 %s1494, 2
        %s1499 = smul.u32 %s1498, 8
        %s1500 = sadd.s32 %s1499, %s1497
        %s1501 = scalar_lea.vmem [#allocation4], %s1500
        %v1502 = vld [vmem:[%s1501] ss:$8 sm:$0x3]
        %s1503 = sadd.s32 %s116, 58
        %s1504 = sld [smem:[#allocation3 + %s1503]]
        %s1505 = sshra.s32 %s1504, 3
        %s1506 = sand.u32 %s1504, 7
        %s1507 = sshra.s32 %s1504, 3
        %s1508 = sand.u32 %s1504, 7
        %s1509 = smul.u32 %s1505, 2
        %s1510 = smul.u32 %s1509, 8
        %s1511 = sadd.s32 %s1510, %s1508
        %s1512 = scalar_lea.vmem [#allocation4], %s1511
        %v1513 = vld [vmem:[%s1512] ss:$8 sm:$0x3]
        %s1514 = sadd.s32 %s116, 59
        %s1515 = sld [smem:[#allocation3 + %s1514]]
        %s1516 = sshra.s32 %s1515, 3
        %s1517 = sand.u32 %s1515, 7
        %s1518 = sshra.s32 %s1515, 3
        %s1519 = sand.u32 %s1515, 7
        %s1520 = smul.u32 %s1516, 2
        %s1521 = smul.u32 %s1520, 8
        %s1522 = sadd.s32 %s1521, %s1519
        %s1523 = scalar_lea.vmem [#allocation4], %s1522
        %v1524 = vld [vmem:[%s1523] ss:$8 sm:$0x3]
        %s1525 = sadd.s32 %s116, 60
        %s1526 = sld [smem:[#allocation3 + %s1525]]
        %s1527 = sshra.s32 %s1526, 3
        %s1528 = sand.u32 %s1526, 7
        %s1529 = sshra.s32 %s1526, 3
        %s1530 = sand.u32 %s1526, 7
        %s1531 = smul.u32 %s1527, 2
        %s1532 = smul.u32 %s1531, 8
        %s1533 = sadd.s32 %s1532, %s1530
        %s1534 = scalar_lea.vmem [#allocation4], %s1533
        %v1535 = vld [vmem:[%s1534] ss:$8 sm:$0x3]
        %s1536 = sadd.s32 %s116, 61
        %s1537 = sld [smem:[#allocation3 + %s1536]]
        %s1538 = sshra.s32 %s1537, 3
        %s1539 = sand.u32 %s1537, 7
        %s1540 = sshra.s32 %s1537, 3
        %s1541 = sand.u32 %s1537, 7
        %s1542 = smul.u32 %s1538, 2
        %s1543 = smul.u32 %s1542, 8
        %s1544 = sadd.s32 %s1543, %s1541
        %s1545 = scalar_lea.vmem [#allocation4], %s1544
        %v1546 = vld [vmem:[%s1545] ss:$8 sm:$0x3]
        %s1547 = sadd.s32 %s116, 62
        %s1548 = sld [smem:[#allocation3 + %s1547]]
        %s1549 = sshra.s32 %s1548, 3
        %s1550 = sand.u32 %s1548, 7
        %s1551 = sshra.s32 %s1548, 3
        %s1552 = sand.u32 %s1548, 7
        %s1553 = smul.u32 %s1549, 2
        %s1554 = smul.u32 %s1553, 8
        %s1555 = sadd.s32 %s1554, %s1552
        %s1556 = scalar_lea.vmem [#allocation4], %s1555
        %v1557 = vld [vmem:[%s1556] ss:$8 sm:$0x3]
        %s1558 = sadd.s32 %s116, 63
        %s1559 = sld [smem:[#allocation3 + %s1558]]
        %s1560 = sshra.s32 %s1559, 3
        %s1561 = sand.u32 %s1559, 7
        %s1562 = sshra.s32 %s1559, 3
        %s1563 = sand.u32 %s1559, 7
        %s1564 = smul.u32 %s1560, 2
        %s1565 = smul.u32 %s1564, 8
        %s1566 = sadd.s32 %s1565, %s1563
        %s1567 = scalar_lea.vmem [#allocation4], %s1566
        %v1568 = vld [vmem:[%s1567] ss:$8 sm:$0x3]
        %v1570 = vlaneseq
        %v1571 = vshrl.u32 %v1570, 7
        %v1572 = vsub.s32 0, %v1571
        %v1573 = vrot.slane %v1491, %v1572
        %v1574 = vlaneseq
        %v1575 = vshrl.u32 %v1574, 7
        %v1576 = vsub.s32 1, %v1575
        %v1577 = vrot.slane %v1491, %v1576
        %v1581 = vlaneseq
        %v1582 = vshrl.u32 %v1581, 7
        %v1583 = vsub.s32 0, %v1582
        %v1584 = vrot.slane %v1502, %v1583
        %v1585 = vlaneseq
        %v1586 = vshrl.u32 %v1585, 7
        %v1587 = vsub.s32 1, %v1586
        %v1588 = vrot.slane %v1502, %v1587
        %v1592 = vlaneseq
        %v1593 = vshrl.u32 %v1592, 7
        %v1594 = vsub.s32 0, %v1593
        %v1595 = vrot.slane %v1513, %v1594
        %v1596 = vlaneseq
        %v1597 = vshrl.u32 %v1596, 7
        %v1598 = vsub.s32 1, %v1597
        %v1599 = vrot.slane %v1513, %v1598
        %v1603 = vlaneseq
        %v1604 = vshrl.u32 %v1603, 7
        %v1605 = vsub.s32 0, %v1604
        %v1606 = vrot.slane %v1524, %v1605
        %v1607 = vlaneseq
        %v1608 = vshrl.u32 %v1607, 7
        %v1609 = vsub.s32 1, %v1608
        %v1610 = vrot.slane %v1524, %v1609
        %v1614 = vlaneseq
        %v1615 = vshrl.u32 %v1614, 7
        %v1616 = vsub.s32 0, %v1615
        %v1617 = vrot.slane %v1535, %v1616
        %v1618 = vlaneseq
        %v1619 = vshrl.u32 %v1618, 7
        %v1620 = vsub.s32 1, %v1619
        %v1621 = vrot.slane %v1535, %v1620
        %v1625 = vlaneseq
        %v1626 = vshrl.u32 %v1625, 7
        %v1627 = vsub.s32 0, %v1626
        %v1628 = vrot.slane %v1546, %v1627
        %v1629 = vlaneseq
        %v1630 = vshrl.u32 %v1629, 7
        %v1631 = vsub.s32 1, %v1630
        %v1632 = vrot.slane %v1546, %v1631
        %v1636 = vlaneseq
        %v1637 = vshrl.u32 %v1636, 7
        %v1638 = vsub.s32 0, %v1637
        %v1639 = vrot.slane %v1557, %v1638
        %v1640 = vlaneseq
        %v1641 = vshrl.u32 %v1640, 7
        %v1642 = vsub.s32 1, %v1641
        %v1643 = vrot.slane %v1557, %v1642
        %v1647 = vlaneseq
        %v1648 = vshrl.u32 %v1647, 7
        %v1649 = vsub.s32 0, %v1648
        %v1650 = vrot.slane %v1568, %v1649
        %v1651 = vlaneseq
        %v1652 = vshrl.u32 %v1651, 7
        %v1653 = vsub.s32 1, %v1652
        %v1654 = vrot.slane %v1568, %v1653
        %v1657 = vsel %vm292, %v1573, %v1584
        %v1658 = vsel %vm292, %v1577, %v1588
        %v1659 = vsel %vm295, %v1657, %v1595
        %v1660 = vsel %vm295, %v1658, %v1599
        %v1661 = vsel %vm298, %v1659, %v1606
        %v1662 = vsel %vm298, %v1660, %v1610
        %v1663 = vsel %vm301, %v1661, %v1617
        %v1664 = vsel %vm301, %v1662, %v1621
        %v1665 = vsel %vm304, %v1663, %v1628
        %v1666 = vsel %vm304, %v1664, %v1632
        %v1667 = vsel %vm307, %v1665, %v1639
        %v1668 = vsel %vm307, %v1666, %v1643
        %v1669 = vsel %vm310, %v1667, %v1650
        %v1670 = vsel %vm310, %v1668, %v1654
        %v1671 = vmul.f32 %v1669, 16.0
        %v1672 = vmul.f32 %v1670, 16.0
        %1673 = vst [vmem:[%s114 + $0x70] sm:$0xff] %v1671
        %1674 = vst [vmem:[%s114 + $0x78] sm:$0xff] %v1672
        %s1675 = sand.u32 %s50, 1
        %s1676 = scalar_lea.sflag [#allocation6], %s1675
        %s1677 = sand.u32 %s50, 1
        %s1678 = smul.addr %s1677, 128
        %s1679 = scalar_lea.vmem [#allocation7], %s1678
        // Predicated region
        $region29: #{tpu_custom_call.1} parent=23 // pred_check
          %p1680 = pneg %p60
        $region30: #{tpu_custom_call.1} parent=23 // pred_check_branch
          %1682 = sbr.rel (%p1680) target = $region32
        $region31: #{tpu_custom_call.1} parent=23 // pred_region
          %s1683 = smul.u32 8, %s21
          %s1685 = ssub.s32 2048, 2048
          %1686 = vsyncadd %s1676, %s1685
          %s1687 = smul.addr %s1683, 2
          %s1688 = smul.addr %s1687, 128
          %s1689 = scalar_lea.hbm %s2, %s1688
          %s1690 = sshll.u32 %s1679, 4
          %s1691 = int_to_ptr.vmem [resolvable:$true] %s1690
          %1696 = dma.vmem_to_hbm [thread:$0]  %s1691, 2048, %s1689, %s1676, 256, 256, 16
        $region32: #{tpu_custom_call.1} parent=23 // pred_fallthru
          _
      $region24: #{tpu_custom_call.1} parent=5 // pred_fallthru
        _
      %p1697 = scmp.le.s32.totalorder 2, %s16
      // Predicated region
      $region33: #{tpu_custom_call.1} parent=5 // pred_check
        %p1698 = pneg %p1697
      $region34: #{tpu_custom_call.1} parent=5 // pred_check_branch
        %1700 = sbr.rel (%p1698) target = $region36
      $region35: #{tpu_custom_call.1} parent=5 // pred_region
        %s1701 = ssub.s32 %s16, 2
        // Predicated region
        $region37: #{tpu_custom_call.1} parent=35 // pred_check
          %p1702 = pneg %p66
        $region38: #{tpu_custom_call.1} parent=35 // pred_check_branch
          %1704 = sbr.rel (%p1702) target = $region40
        $region39: #{tpu_custom_call.1} parent=35 // pred_region
          %s1705 = sand.u32 %s51, 1
          %s1706 = scalar_lea.sflag [#allocation6], %s1705
          %s1707 = sand.u32 %s51, 1
          %s1708 = smul.addr %s1707, 128
          %s1709 = scalar_lea.vmem [#allocation7], %s1708
          %1710 = dma.done %s1706, 2048
        $region40: #{tpu_custom_call.1} parent=35 // pred_fallthru
          _
      $region36: #{tpu_custom_call.1} parent=5 // pred_fallthru
        _
    $region6: #{tpu_custom_call.1} parent=1 // loop_footer
      %s20 = sadd.s32 1, %s16
    $region7: #{tpu_custom_call.1} parent=1 // loop_footer_branch
      %15 = sbr.rel target = $region3
    $region8: #{tpu_custom_call.1} parent=1 // loop_exit
      _
    %1711 = vsyncpa [#allocation5], 1
    %s1712 = scalar_lea.sflag [#allocation5], 1
    %1713 = vsyncpa %s1712, 1
    %1714 = vsyncpa [#allocation6], 1
    %s1715 = scalar_lea.sflag [#allocation6], 1
    %1716 = vsyncpa %s1715, 1

</llo_original>
